<compile_context>
chip_gen: v6e
topology: v6e:2x2x1
jax: 0.10.0
libtpu: 0.0.40
codegen_flags: <defaults>
</compile_context>

<pallas_src>
import math

import jax
import jax.numpy as jnp
import numpy as np
from jax import lax
from jax.experimental import pallas as pl
from jax.experimental.pallas import tpu as pltpu

# ---- model config (small, consistent with the module's structure) ----------
BATCH = 2
SEQ = 8
D_MODEL = 32
N_HEADS = 4
HEAD_DIM = D_MODEL // N_HEADS
DFF = 4 * D_MODEL          # 128; the parameter packing below relies on DFF == 4*D_MODEL
LN_EPS = 1e-5

# dot_general contracting the LAST dim of both operands (A @ B^T, no transpose materialized)
_CONTRACT_LAST_2D = (((1,), (1,)), ((), ()))


def _layer_norm(v, w, b, eps=LN_EPS):
    mu = jnp.mean(v, axis=-1, keepdims=True)
    var = jnp.mean(jnp.square(v - mu), axis=-1, keepdims=True)
    return (v - mu) * lax.rsqrt(var + eps) * w + b


def _gelu_exact(v):
    # nn.GELU() default = exact erf-based GELU
    return 0.5 * v * (1.0 + lax.erf(v * (1.0 / math.sqrt(2.0))))


def encoder_layer_kernel(x_ref, wbig_ref, slab2_ref, out_ref):
    D, HD, S, B, H, F = D_MODEL, HEAD_DIM, SEQ, BATCH, N_HEADS, DFF

    x = x_ref[...].astype(jnp.float32)              # (B*S, D), batch flattened into rows

    # ---- parameter slabs (3 input DMAs total, incl. x) -------------------------
    wbig = wbig_ref[...]                            # (D, 3D+F): [w_q | w_k | w_v | w1]
    slab2 = slab2_ref[...]                          # (D+3, F):  [w2^T ; small params]
    w_qkv = wbig[:, 0:3 * D]                        # (D, 3D)
    w1 = wbig[:, 3 * D:3 * D + F]                   # (D, F)
    w2t = slab2[0:D, :]                             # (D, F) == w2^T  (sublane-aligned rows)

    sp = slab2[D:D + 3, :]                          # (3, F) small-parameter bank
    b_qkv = sp[0:1, 0:3 * D]                        # (1, 3D)  q|k|v biases
    b2 = sp[0:1, 3 * D:4 * D]                       # (1, D)
    b1 = sp[1:2, :]                                 # (1, F)
    ln_enc_w = sp[2:3, 0:D]
    ln_enc_b = sp[2:3, D:2 * D]
    ln_pff_w = sp[2:3, 2 * D:3 * D]
    ln_pff_b = sp[2:3, 3 * D:4 * D]

    # ---- fused QKV projection: single (B*S, D) x (D, 3D) MXU pass --------------
    qkv = jnp.dot(x, w_qkv, preferred_element_type=jnp.float32) + b_qkv

    # View rows as (B, S, ...): sublane-tile-aligned split (S == 8), no relayout.
    q3 = qkv[:, 0:D].reshape(B, S, D)
    k3 = qkv[:, D:2 * D].reshape(B, S, D)
    v3 = qkv[:, 2 * D:3 * D].reshape(B, S, D)

    inv_scale = 1.0 / math.sqrt(HD)

    # ---- multi-head self-attention: loop over heads, batched over B via einsum --
    # No scratch stores: head contexts stay in registers and are lane-concatenated.
    ctx = []
    for h in range(H):
        c0 = h * HD
        qh = q3[:, :, c0:c0 + HD]                   # (B, S, HD)
        kh = k3[:, :, c0:c0 + HD]
        vh = v3[:, :, c0:c0 + HD]
        s = jnp.einsum("bqd,bkd->bqk", qh, kh,
                       preferred_element_type=jnp.float32) * inv_scale
        s = s - jnp.max(s, axis=-1, keepdims=True)
        p = jnp.exp(s)
        p = p / jnp.sum(p, axis=-1, keepdims=True)  # exact divide (approx recip dropped)
        # TODO(synk): attn_mask not supported (mask=None path only); dropout = eval identity.
        ctx.append(jnp.einsum("bqk,bkd->bqd", p, vh,
                              preferred_element_type=jnp.float32))
    attn = jnp.concatenate(ctx, axis=-1).reshape(B * S, D)   # (B*S, D) value, no scratch

    # ---- residual 1: x + LN_enc(attn_out) --------------------------------------
    x1 = x + _layer_norm(attn, ln_enc_w, ln_enc_b)

    # ---- position-wise feed forward ---------------------------------------------
    h1 = _gelu_exact(jnp.dot(x1, w1, preferred_element_type=jnp.float32) + b1)
    h2 = lax.dot_general(h1, w2t, _CONTRACT_LAST_2D,
                         preferred_element_type=jnp.float32) + b2   # == h1 @ w2
    pff = _layer_norm(h2, ln_pff_w, ln_pff_b)

    # ---- residual 2: x1 + LN_enc(pff_out) ----------------------------------------
    out = x1 + _layer_norm(pff, ln_enc_w, ln_enc_b)
    out_ref[...] = out.astype(out_ref.dtype)


def pack_params(params):
    """Pack the 14 PyTorch-style params into 2 dense slabs (3 kernel inputs incl. x)."""
    (wq, bq, wk, bk, wv, bv, ln_enc_w, ln_enc_b,
     w1, b1, w2, b2, ln_pff_w, ln_pff_b) = params
    # Big-weight slab: [w_q | w_k | w_v | w1] -> (D, 3D + DFF)
    w_big = jnp.concatenate([wq, wk, wv, w1], axis=1).astype(jnp.float32)
    # Second slab: w2^T on rows [0, D) (8-aligned rows for the A @ B^T matmul),
    # followed by the small-parameter bank on rows [D, D+3).
    row0 = jnp.concatenate([bq, bk, bv, b2])                          # (4D,) == (DFF,)
    row1 = b1                                                         # (DFF,)
    row2 = jnp.concatenate([ln_enc_w, ln_enc_b, ln_pff_w, ln_pff_b])  # (4D,)
    smalls = jnp.stack([row0, row1, row2]).astype(jnp.float32)        # (3, DFF)
    slab2 = jnp.concatenate([w2.T.astype(jnp.float32), smalls], axis=0)  # (D+3, DFF)
    return w_big, slab2


def encoder_layer(x, params):
    """x: (B, S, D) float32. params: list of 14 parameter arrays (see init_params)."""
    B, S, D = x.shape
    assert B == BATCH and S == SEQ and D == D_MODEL and DFF == 4 * D_MODEL
    w_big, slab2 = pack_params(params)

    # Flatten batch into rows wrapper-side (free); single gridless kernel invocation
    # (at B*S = 16 rows the ~0.35 us/step grid overhead would exceed the compute).
    x2d = x.reshape(B * S, D)

    # NOTE(scaling / v5e,v6e,v7x): at realistic sizes, reintroduce a grid:
    #   * tile the (B*S) rows and mark that axis "parallel" so v7x's 2 TensorCores
    #     both run (megacore); reduction (K / DFF) axes last and "arbitrary".
    #   * give the weight slabs constant-index BlockSpecs so they stay VMEM-resident
    #     instead of re-DMAing every grid step.
    #   * size matmul tiles for the MXU: M >= 256 and N a multiple of 256, K ~ 256 on
    #     v6e/v7x (128-multiples suffice for v5e's 4x128x128 MXUs).
    #   * re-derive the row tile for v7x's 64 MiB VMEM (32 MiB scoped default); the
    #     (rows x DFF) f32 intermediate dominates — set vmem_limit_bytes explicitly.
    #   * cast matmul operands (x/x1/h1 and the weight slabs) to bf16 with f32
    #     accumulation on v6e/v7x (~3x MXU throughput, half the weight DMA bytes);
    #     keep LayerNorm/GELU/softmax math in f32 (mandatory on v5e: no bf16 VPU/EUP).
    #     Not enabled at this toy size: launch/DMA-bound, and the LayerNorms amplify
    #     bf16 rounding ~10x here, which would only force a looser tolerance.
    out2d = pl.pallas_call(
        encoder_layer_kernel,
        out_shape=jax.ShapeDtypeStruct((B * S, D), x.dtype),
        compiler_params=pltpu.CompilerParams(vmem_limit_bytes=16 * 1024 * 1024),
    )(x2d, w_big, slab2)

    return out2d.reshape(B, S, D)


def init_params(key):
    """Deterministic synthetic parameters; Linear weights stored as (in, out)."""
    ks = jax.random.split(key, 8)
    s = 0.05
    wq = jax.random.normal(ks[0], (D_MODEL, D_MODEL), jnp.float32) * s
    bq = jax.random.normal(ks[1], (D_MODEL,), jnp.float32) * s
    wk = jax.random.normal(ks[2], (D_MODEL, D_MODEL), jnp.float32) * s
    bk = jax.random.normal(ks[3], (D_MODEL,), jnp.float32) * s
    wv = jax.random.normal(ks[4], (D_MODEL, D_MODEL), jnp.float32) * s
    bv = jax.random.normal(ks[5], (D_MODEL,), jnp.float32) * s
    ln_enc_w = jnp.ones((D_MODEL,), jnp.float32)
    ln_enc_b = jnp.zeros((D_MODEL,), jnp.float32)
    w1 = jax.random.normal(ks[6], (D_MODEL, DFF), jnp.float32) * s
    b1 = jnp.zeros((DFF,), jnp.float32)
    w2 = jax.random.normal(ks[7], (DFF, D_MODEL), jnp.float32) * s
    b2 = jnp.zeros((D_MODEL,), jnp.float32)
    ln_pff_w = jnp.ones((D_MODEL,), jnp.float32)
    ln_pff_b = jnp.zeros((D_MODEL,), jnp.float32)
    return [wq, bq, wk, bk, wv, bv, ln_enc_w, ln_enc_b,
            w1, b1, w2, b2, ln_pff_w, ln_pff_b]


def reference_encoder_layer(x, params):
    (wq, bq, wk, bk, wv, bv, ln_enc_w, ln_enc_b,
     w1, b1, w2, b2, ln_pff_w, ln_pff_b) = params
    B, S, D = x.shape

    def ln(v, w, b):
        mu = jnp.mean(v, axis=-1, keepdims=True)
        var = jnp.mean(jnp.square(v - mu), axis=-1, keepdims=True)
        return (v - mu) / jnp.sqrt(var + LN_EPS) * w + b

    q = (x @ wq + bq).reshape(B, S, N_HEADS, HEAD_DIM).transpose(0, 2, 1, 3)
    k = (x @ wk + bk).reshape(B, S, N_HEADS, HEAD_DIM).transpose(0, 2, 1, 3)
    v = (x @ wv + bv).reshape(B, S, N_HEADS, HEAD_DIM).transpose(0, 2, 1, 3)
    score = jnp.einsum("bhqd,bhkd->bhqk", q, k) / math.sqrt(HEAD_DIM)
    attn = jax.nn.softmax(score, axis=-1)
    weighted = jnp.einsum("bhqk,bhkd->bhqd", attn, v)
    attn_out = weighted.transpose(0, 2, 1, 3).reshape(B, S, D)

    x1 = x + ln(attn_out, ln_enc_w, ln_enc_b)
    h = jax.nn.gelu(x1 @ w1 + b1, approximate=False)
    pff_out = ln(h @ w2 + b2, ln_pff_w, ln_pff_b)
    return x1 + ln(pff_out, ln_enc_w, ln_enc_b)


if __name__ == "__main__":
    key = jax.random.PRNGKey(0)
    kx, kp = jax.random.split(key)
    x = jax.random.normal(kx, (BATCH, SEQ, D_MODEL), jnp.float32)
    params = init_params(kp)

    out = encoder_layer(x, params)
    out = jax.block_until_ready(out)

    ref = reference_encoder_layer(x, params)
    # The kernel no longer contains any approximation (approx reciprocal removed per
    # review); the remaining tolerance headroom covers XLA-vs-Mosaic default matmul
    # precision differences (TPU may lower default-precision f32 dots to bf16 passes),
    # amplified by the LayerNorms at this small parameter scale.
    np.testing.assert_allclose(np.asarray(out), np.asarray(ref), atol=5e-3, rtol=5e-3)

    print("KERNEL_OK")
</pallas_src>

<mosaic_0001>
module attributes {stable_mosaic.version = 11 : i64} {
  func.func @encoder_layer_kernel(%arg0: memref<16x32xf32, #tpu.memory_space<vmem>>, %arg1: memref<32x224xf32, #tpu.memory_space<vmem>>, %arg2: memref<35x128xf32, #tpu.memory_space<vmem>>, %arg3: memref<16x32xf32, #tpu.memory_space<vmem>>) attributes {dimension_semantics = [], scalar_prefetch = 0 : i64, scratch_operands = 0 : i64, tpu.core_type = #tpu.core_type<tc>} {
    %c0 = arith.constant 0 : index
    %c0_0 = arith.constant 0 : index
    %0 = vector.load %arg0[%c0, %c0_0] : memref<16x32xf32, #tpu.memory_space<vmem>>, vector<16x32xf32>
    %c0_1 = arith.constant 0 : index
    %c0_2 = arith.constant 0 : index
    %1 = vector.load %arg1[%c0_1, %c0_2] : memref<32x224xf32, #tpu.memory_space<vmem>>, vector<32x224xf32>
    %c0_3 = arith.constant 0 : index
    %c0_4 = arith.constant 0 : index
    %2 = vector.load %arg2[%c0_3, %c0_4] : memref<35x128xf32, #tpu.memory_space<vmem>>, vector<35x128xf32>
    %3 = vector.extract_strided_slice %1 {offsets = [0, 0], sizes = [32, 96], strides = [1, 1]} : vector<32x224xf32> to vector<32x96xf32>
    %4 = vector.extract_strided_slice %1 {offsets = [0, 96], sizes = [32, 128], strides = [1, 1]} : vector<32x224xf32> to vector<32x128xf32>
    %5 = vector.extract_strided_slice %2 {offsets = [0, 0], sizes = [32, 128], strides = [1, 1]} : vector<35x128xf32> to vector<32x128xf32>
    %6 = vector.extract_strided_slice %2 {offsets = [32, 0], sizes = [3, 128], strides = [1, 1]} : vector<35x128xf32> to vector<3x128xf32>
    %7 = vector.extract_strided_slice %6 {offsets = [0, 0], sizes = [1, 96], strides = [1, 1]} : vector<3x128xf32> to vector<1x96xf32>
    %8 = vector.extract_strided_slice %6 {offsets = [0, 96], sizes = [1, 32], strides = [1, 1]} : vector<3x128xf32> to vector<1x32xf32>
    %9 = vector.extract_strided_slice %6 {offsets = [1, 0], sizes = [1, 128], strides = [1, 1]} : vector<3x128xf32> to vector<1x128xf32>
    %10 = vector.extract_strided_slice %6 {offsets = [2, 0], sizes = [1, 32], strides = [1, 1]} : vector<3x128xf32> to vector<1x32xf32>
    %11 = vector.extract_strided_slice %6 {offsets = [2, 32], sizes = [1, 32], strides = [1, 1]} : vector<3x128xf32> to vector<1x32xf32>
    %12 = vector.extract_strided_slice %6 {offsets = [2, 64], sizes = [1, 32], strides = [1, 1]} : vector<3x128xf32> to vector<1x32xf32>
    %13 = vector.extract_strided_slice %6 {offsets = [2, 96], sizes = [1, 32], strides = [1, 1]} : vector<3x128xf32> to vector<1x32xf32>
    %cst = arith.constant dense<0.000000e+00> : vector<16x96xf32>
    %14 = tpu.matmul %0, %3, %cst {dimension_numbers = #tpu.dot_dimension_numbers<[1], [0], [0], [1], [0, 0, 1, 1], [], []>} : vector<16x32xf32>, vector<32x96xf32>, vector<16x96xf32> -> vector<16x96xf32>
    %15 = vector.broadcast %7 : vector<1x96xf32> to vector<16x96xf32>
    %16 = arith.addf %14, %15 : vector<16x96xf32>
    %17 = vector.extract_strided_slice %16 {offsets = [0, 0], sizes = [16, 32], strides = [1, 1]} : vector<16x96xf32> to vector<16x32xf32>
    %18 = vector.shape_cast %17 : vector<16x32xf32> to vector<2x8x32xf32>
    %19 = vector.extract_strided_slice %16 {offsets = [0, 32], sizes = [16, 32], strides = [1, 1]} : vector<16x96xf32> to vector<16x32xf32>
    %20 = vector.shape_cast %19 : vector<16x32xf32> to vector<2x8x32xf32>
    %21 = vector.extract_strided_slice %16 {offsets = [0, 64], sizes = [16, 32], strides = [1, 1]} : vector<16x96xf32> to vector<16x32xf32>
    %22 = vector.shape_cast %21 : vector<16x32xf32> to vector<2x8x32xf32>
    %23 = vector.extract_strided_slice %18 {offsets = [0, 0, 0], sizes = [2, 8, 8], strides = [1, 1, 1]} : vector<2x8x32xf32> to vector<2x8x8xf32>
    %24 = vector.extract_strided_slice %20 {offsets = [0, 0, 0], sizes = [2, 8, 8], strides = [1, 1, 1]} : vector<2x8x32xf32> to vector<2x8x8xf32>
    %25 = vector.extract_strided_slice %22 {offsets = [0, 0, 0], sizes = [2, 8, 8], strides = [1, 1, 1]} : vector<2x8x32xf32> to vector<2x8x8xf32>
    "tpu.trace_start"() <{level = 10 : i32, message = "bqd,bkd->bqk"}> : () -> ()
    %cst_5 = arith.constant dense<0.000000e+00> : vector<2x8x8xf32>
    %26 = tpu.matmul %23, %24, %cst_5 {dimension_numbers = #tpu.dot_dimension_numbers<[2], [2], [1], [1], [0, 0, 0, 1, 1, 1], [0], [0]>} : vector<2x8x8xf32>, vector<2x8x8xf32>, vector<2x8x8xf32> -> vector<2x8x8xf32>
    "tpu.trace_stop"() : () -> ()
    %cst_6 = arith.constant 0.353553385 : f32
    %27 = vector.broadcast %cst_6 : f32 to vector<2x8x8xf32>
    %28 = arith.mulf %26, %27 : vector<2x8x8xf32>
    %cst_7 = arith.constant dense<0xFF800000> : vector<2x8xf32>
    %29 = vector.multi_reduction <maximumf>, %28, %cst_7 [2] : vector<2x8x8xf32> to vector<2x8xf32>
    %30 = vector.shape_cast %29 : vector<2x8xf32> to vector<2x8x1xf32>
    %31 = vector.broadcast %30 : vector<2x8x1xf32> to vector<2x8x8xf32>
    %32 = arith.subf %28, %31 : vector<2x8x8xf32>
    %33 = math.exp %32 : vector<2x8x8xf32>
    %cst_8 = arith.constant dense<0.000000e+00> : vector<2x8xf32>
    %34 = vector.multi_reduction <add>, %33, %cst_8 [2] : vector<2x8x8xf32> to vector<2x8xf32>
    %35 = vector.shape_cast %34 : vector<2x8xf32> to vector<2x8x1xf32>
    %36 = vector.broadcast %35 : vector<2x8x1xf32> to vector<2x8x8xf32>
    %37 = arith.divf %33, %36 : vector<2x8x8xf32>
    "tpu.trace_start"() <{level = 10 : i32, message = "bqk,bkd->bqd"}> : () -> ()
    %cst_9 = arith.constant dense<0.000000e+00> : vector<2x8x8xf32>
    %38 = tpu.matmul %37, %25, %cst_9 {dimension_numbers = #tpu.dot_dimension_numbers<[2], [1], [1], [2], [0, 0, 0, 1, 1, 2], [0], [0]>} : vector<2x8x8xf32>, vector<2x8x8xf32>, vector<2x8x8xf32> -> vector<2x8x8xf32>
    "tpu.trace_stop"() : () -> ()
    %39 = vector.extract_strided_slice %18 {offsets = [0, 0, 8], sizes = [2, 8, 8], strides = [1, 1, 1]} : vector<2x8x32xf32> to vector<2x8x8xf32>
    %40 = vector.extract_strided_slice %20 {offsets = [0, 0, 8], sizes = [2, 8, 8], strides = [1, 1, 1]} : vector<2x8x32xf32> to vector<2x8x8xf32>
    %41 = vector.extract_strided_slice %22 {offsets = [0, 0, 8], sizes = [2, 8, 8], strides = [1, 1, 1]} : vector<2x8x32xf32> to vector<2x8x8xf32>
    "tpu.trace_start"() <{level = 10 : i32, message = "bqd,bkd->bqk"}> : () -> ()
    %cst_10 = arith.constant dense<0.000000e+00> : vector<2x8x8xf32>
    %42 = tpu.matmul %39, %40, %cst_10 {dimension_numbers = #tpu.dot_dimension_numbers<[2], [2], [1], [1], [0, 0, 0, 1, 1, 1], [0], [0]>} : vector<2x8x8xf32>, vector<2x8x8xf32>, vector<2x8x8xf32> -> vector<2x8x8xf32>
    "tpu.trace_stop"() : () -> ()
    %cst_11 = arith.constant 0.353553385 : f32
    %43 = vector.broadcast %cst_11 : f32 to vector<2x8x8xf32>
    %44 = arith.mulf %42, %43 : vector<2x8x8xf32>
    %cst_12 = arith.constant dense<0xFF800000> : vector<2x8xf32>
    %45 = vector.multi_reduction <maximumf>, %44, %cst_12 [2] : vector<2x8x8xf32> to vector<2x8xf32>
    %46 = vector.shape_cast %45 : vector<2x8xf32> to vector<2x8x1xf32>
    %47 = vector.broadcast %46 : vector<2x8x1xf32> to vector<2x8x8xf32>
    %48 = arith.subf %44, %47 : vector<2x8x8xf32>
    %49 = math.exp %48 : vector<2x8x8xf32>
    %cst_13 = arith.constant dense<0.000000e+00> : vector<2x8xf32>
    %50 = vector.multi_reduction <add>, %49, %cst_13 [2] : vector<2x8x8xf32> to vector<2x8xf32>
    %51 = vector.shape_cast %50 : vector<2x8xf32> to vector<2x8x1xf32>
    %52 = vector.broadcast %51 : vector<2x8x1xf32> to vector<2x8x8xf32>
    %53 = arith.divf %49, %52 : vector<2x8x8xf32>
    "tpu.trace_start"() <{level = 10 : i32, message = "bqk,bkd->bqd"}> : () -> ()
    %cst_14 = arith.constant dense<0.000000e+00> : vector<2x8x8xf32>
    %54 = tpu.matmul %53, %41, %cst_14 {dimension_numbers = #tpu.dot_dimension_numbers<[2], [1], [1], [2], [0, 0, 0, 1, 1, 2], [0], [0]>} : vector<2x8x8xf32>, vector<2x8x8xf32>, vector<2x8x8xf32> -> vector<2x8x8xf32>
    "tpu.trace_stop"() : () -> ()
    %55 = vector.extract_strided_slice %18 {offsets = [0, 0, 16], sizes = [2, 8, 8], strides = [1, 1, 1]} : vector<2x8x32xf32> to vector<2x8x8xf32>
    %56 = vector.extract_strided_slice %20 {offsets = [0, 0, 16], sizes = [2, 8, 8], strides = [1, 1, 1]} : vector<2x8x32xf32> to vector<2x8x8xf32>
    %57 = vector.extract_strided_slice %22 {offsets = [0, 0, 16], sizes = [2, 8, 8], strides = [1, 1, 1]} : vector<2x8x32xf32> to vector<2x8x8xf32>
    "tpu.trace_start"() <{level = 10 : i32, message = "bqd,bkd->bqk"}> : () -> ()
    %cst_15 = arith.constant dense<0.000000e+00> : vector<2x8x8xf32>
    %58 = tpu.matmul %55, %56, %cst_15 {dimension_numbers = #tpu.dot_dimension_numbers<[2], [2], [1], [1], [0, 0, 0, 1, 1, 1], [0], [0]>} : vector<2x8x8xf32>, vector<2x8x8xf32>, vector<2x8x8xf32> -> vector<2x8x8xf32>
    "tpu.trace_stop"() : () -> ()
    %cst_16 = arith.constant 0.353553385 : f32
    %59 = vector.broadcast %cst_16 : f32 to vector<2x8x8xf32>
    %60 = arith.mulf %58, %59 : vector<2x8x8xf32>
    %cst_17 = arith.constant dense<0xFF800000> : vector<2x8xf32>
    %61 = vector.multi_reduction <maximumf>, %60, %cst_17 [2] : vector<2x8x8xf32> to vector<2x8xf32>
    %62 = vector.shape_cast %61 : vector<2x8xf32> to vector<2x8x1xf32>
    %63 = vector.broadcast %62 : vector<2x8x1xf32> to vector<2x8x8xf32>
    %64 = arith.subf %60, %63 : vector<2x8x8xf32>
    %65 = math.exp %64 : vector<2x8x8xf32>
    %cst_18 = arith.constant dense<0.000000e+00> : vector<2x8xf32>
    %66 = vector.multi_reduction <add>, %65, %cst_18 [2] : vector<2x8x8xf32> to vector<2x8xf32>
    %67 = vector.shape_cast %66 : vector<2x8xf32> to vector<2x8x1xf32>
    %68 = vector.broadcast %67 : vector<2x8x1xf32> to vector<2x8x8xf32>
    %69 = arith.divf %65, %68 : vector<2x8x8xf32>
    "tpu.trace_start"() <{level = 10 : i32, message = "bqk,bkd->bqd"}> : () -> ()
    %cst_19 = arith.constant dense<0.000000e+00> : vector<2x8x8xf32>
    %70 = tpu.matmul %69, %57, %cst_19 {dimension_numbers = #tpu.dot_dimension_numbers<[2], [1], [1], [2], [0, 0, 0, 1, 1, 2], [0], [0]>} : vector<2x8x8xf32>, vector<2x8x8xf32>, vector<2x8x8xf32> -> vector<2x8x8xf32>
    "tpu.trace_stop"() : () -> ()
    %71 = vector.extract_strided_slice %18 {offsets = [0, 0, 24], sizes = [2, 8, 8], strides = [1, 1, 1]} : vector<2x8x32xf32> to vector<2x8x8xf32>
    %72 = vector.extract_strided_slice %20 {offsets = [0, 0, 24], sizes = [2, 8, 8], strides = [1, 1, 1]} : vector<2x8x32xf32> to vector<2x8x8xf32>
    %73 = vector.extract_strided_slice %22 {offsets = [0, 0, 24], sizes = [2, 8, 8], strides = [1, 1, 1]} : vector<2x8x32xf32> to vector<2x8x8xf32>
    "tpu.trace_start"() <{level = 10 : i32, message = "bqd,bkd->bqk"}> : () -> ()
    %cst_20 = arith.constant dense<0.000000e+00> : vector<2x8x8xf32>
    %74 = tpu.matmul %71, %72, %cst_20 {dimension_numbers = #tpu.dot_dimension_numbers<[2], [2], [1], [1], [0, 0, 0, 1, 1, 1], [0], [0]>} : vector<2x8x8xf32>, vector<2x8x8xf32>, vector<2x8x8xf32> -> vector<2x8x8xf32>
    "tpu.trace_stop"() : () -> ()
    %cst_21 = arith.constant 0.353553385 : f32
    %75 = vector.broadcast %cst_21 : f32 to vector<2x8x8xf32>
    %76 = arith.mulf %74, %75 : vector<2x8x8xf32>
    %cst_22 = arith.constant dense<0xFF800000> : vector<2x8xf32>
    %77 = vector.multi_reduction <maximumf>, %76, %cst_22 [2] : vector<2x8x8xf32> to vector<2x8xf32>
    %78 = vector.shape_cast %77 : vector<2x8xf32> to vector<2x8x1xf32>
    %79 = vector.broadcast %78 : vector<2x8x1xf32> to vector<2x8x8xf32>
    %80 = arith.subf %76, %79 : vector<2x8x8xf32>
    %81 = math.exp %80 : vector<2x8x8xf32>
    %cst_23 = arith.constant dense<0.000000e+00> : vector<2x8xf32>
    %82 = vector.multi_reduction <add>, %81, %cst_23 [2] : vector<2x8x8xf32> to vector<2x8xf32>
    %83 = vector.shape_cast %82 : vector<2x8xf32> to vector<2x8x1xf32>
    %84 = vector.broadcast %83 : vector<2x8x1xf32> to vector<2x8x8xf32>
    %85 = arith.divf %81, %84 : vector<2x8x8xf32>
    "tpu.trace_start"() <{level = 10 : i32, message = "bqk,bkd->bqd"}> : () -> ()
    %cst_24 = arith.constant dense<0.000000e+00> : vector<2x8x8xf32>
    %86 = tpu.matmul %85, %73, %cst_24 {dimension_numbers = #tpu.dot_dimension_numbers<[2], [1], [1], [2], [0, 0, 0, 1, 1, 2], [0], [0]>} : vector<2x8x8xf32>, vector<2x8x8xf32>, vector<2x8x8xf32> -> vector<2x8x8xf32>
    "tpu.trace_stop"() : () -> ()
    %87 = tpu.concatenate %38, %54, %70, %86 in 2 : vector<2x8x8xf32>, vector<2x8x8xf32>, vector<2x8x8xf32>, vector<2x8x8xf32> -> vector<2x8x32xf32>
    %88 = vector.shape_cast %87 : vector<2x8x32xf32> to vector<16x32xf32>
    %cst_25 = arith.constant dense<0.000000e+00> : vector<16xf32>
    %89 = vector.multi_reduction <add>, %88, %cst_25 [1] : vector<16x32xf32> to vector<16xf32>
    %90 = vector.shape_cast %89 : vector<16xf32> to vector<16x1xf32>
    %cst_26 = arith.constant 3.200000e+01 : f32
    %91 = vector.broadcast %cst_26 : f32 to vector<16x1xf32>
    %92 = arith.divf %90, %91 : vector<16x1xf32>
    %93 = vector.broadcast %92 : vector<16x1xf32> to vector<16x32xf32>
    %94 = arith.subf %88, %93 : vector<16x32xf32>
    %95 = arith.mulf %94, %94 : vector<16x32xf32>
    %cst_27 = arith.constant dense<0.000000e+00> : vector<16xf32>
    %96 = vector.multi_reduction <add>, %95, %cst_27 [1] : vector<16x32xf32> to vector<16xf32>
    %97 = vector.shape_cast %96 : vector<16xf32> to vector<16x1xf32>
    %cst_28 = arith.constant 3.200000e+01 : f32
    %98 = vector.broadcast %cst_28 : f32 to vector<16x1xf32>
    %99 = arith.divf %97, %98 : vector<16x1xf32>
    %100 = vector.broadcast %92 : vector<16x1xf32> to vector<16x32xf32>
    %101 = arith.subf %88, %100 : vector<16x32xf32>
    %cst_29 = arith.constant 9.99999974E-6 : f32
    %102 = vector.broadcast %cst_29 : f32 to vector<16x1xf32>
    %103 = arith.addf %99, %102 : vector<16x1xf32>
    %104 = math.rsqrt %103 : vector<16x1xf32>
    %105 = vector.broadcast %104 : vector<16x1xf32> to vector<16x32xf32>
    %106 = arith.mulf %101, %105 : vector<16x32xf32>
    %107 = vector.broadcast %10 : vector<1x32xf32> to vector<16x32xf32>
    %108 = arith.mulf %106, %107 : vector<16x32xf32>
    %109 = vector.broadcast %11 : vector<1x32xf32> to vector<16x32xf32>
    %110 = arith.addf %108, %109 : vector<16x32xf32>
    %111 = arith.addf %0, %110 : vector<16x32xf32>
    %cst_30 = arith.constant dense<0.000000e+00> : vector<16x128xf32>
    %112 = tpu.matmul %111, %4, %cst_30 {dimension_numbers = #tpu.dot_dimension_numbers<[1], [0], [0], [1], [0, 0, 1, 1], [], []>} : vector<16x32xf32>, vector<32x128xf32>, vector<16x128xf32> -> vector<16x128xf32>
    %113 = vector.broadcast %9 : vector<1x128xf32> to vector<16x128xf32>
    %114 = arith.addf %112, %113 : vector<16x128xf32>
    %cst_31 = arith.constant 5.000000e-01 : f32
    %115 = vector.broadcast %cst_31 : f32 to vector<16x128xf32>
    %116 = arith.mulf %115, %114 : vector<16x128xf32>
    %cst_32 = arith.constant 0.707106769 : f32
    %117 = vector.broadcast %cst_32 : f32 to vector<16x128xf32>
    %118 = arith.mulf %114, %117 : vector<16x128xf32>
    %119 = math.erf %118 : vector<16x128xf32>
    %cst_33 = arith.constant 1.000000e+00 : f32
    %120 = vector.broadcast %cst_33 : f32 to vector<16x128xf32>
    %121 = arith.addf %120, %119 : vector<16x128xf32>
    %122 = arith.mulf %116, %121 : vector<16x128xf32>
    %cst_34 = arith.constant dense<0.000000e+00> : vector<16x32xf32>
    %123 = tpu.matmul %122, %5, %cst_34 {dimension_numbers = #tpu.dot_dimension_numbers<[1], [1], [0], [0], [0, 0, 1, 0], [], []>} : vector<16x128xf32>, vector<32x128xf32>, vector<16x32xf32> -> vector<16x32xf32>
    %124 = vector.broadcast %8 : vector<1x32xf32> to vector<16x32xf32>
    %125 = arith.addf %123, %124 : vector<16x32xf32>
    %cst_35 = arith.constant dense<0.000000e+00> : vector<16xf32>
    %126 = vector.multi_reduction <add>, %125, %cst_35 [1] : vector<16x32xf32> to vector<16xf32>
    %127 = vector.shape_cast %126 : vector<16xf32> to vector<16x1xf32>
    %cst_36 = arith.constant 3.200000e+01 : f32
    %128 = vector.broadcast %cst_36 : f32 to vector<16x1xf32>
    %129 = arith.divf %127, %128 : vector<16x1xf32>
    %130 = vector.broadcast %129 : vector<16x1xf32> to vector<16x32xf32>
    %131 = arith.subf %125, %130 : vector<16x32xf32>
    %132 = arith.mulf %131, %131 : vector<16x32xf32>
    %cst_37 = arith.constant dense<0.000000e+00> : vector<16xf32>
    %133 = vector.multi_reduction <add>, %132, %cst_37 [1] : vector<16x32xf32> to vector<16xf32>
    %134 = vector.shape_cast %133 : vector<16xf32> to vector<16x1xf32>
    %cst_38 = arith.constant 3.200000e+01 : f32
    %135 = vector.broadcast %cst_38 : f32 to vector<16x1xf32>
    %136 = arith.divf %134, %135 : vector<16x1xf32>
    %137 = vector.broadcast %129 : vector<16x1xf32> to vector<16x32xf32>
    %138 = arith.subf %125, %137 : vector<16x32xf32>
    %cst_39 = arith.constant 9.99999974E-6 : f32
    %139 = vector.broadcast %cst_39 : f32 to vector<16x1xf32>
    %140 = arith.addf %136, %139 : vector<16x1xf32>
    %141 = math.rsqrt %140 : vector<16x1xf32>
    %142 = vector.broadcast %141 : vector<16x1xf32> to vector<16x32xf32>
    %143 = arith.mulf %138, %142 : vector<16x32xf32>
    %144 = vector.broadcast %12 : vector<1x32xf32> to vector<16x32xf32>
    %145 = arith.mulf %143, %144 : vector<16x32xf32>
    %146 = vector.broadcast %13 : vector<1x32xf32> to vector<16x32xf32>
    %147 = arith.addf %145, %146 : vector<16x32xf32>
    %cst_40 = arith.constant dense<0.000000e+00> : vector<16xf32>
    %148 = vector.multi_reduction <add>, %147, %cst_40 [1] : vector<16x32xf32> to vector<16xf32>
    %149 = vector.shape_cast %148 : vector<16xf32> to vector<16x1xf32>
    %cst_41 = arith.constant 3.200000e+01 : f32
    %150 = vector.broadcast %cst_41 : f32 to vector<16x1xf32>
    %151 = arith.divf %149, %150 : vector<16x1xf32>
    %152 = vector.broadcast %151 : vector<16x1xf32> to vector<16x32xf32>
    %153 = arith.subf %147, %152 : vector<16x32xf32>
    %154 = arith.mulf %153, %153 : vector<16x32xf32>
    %cst_42 = arith.constant dense<0.000000e+00> : vector<16xf32>
    %155 = vector.multi_reduction <add>, %154, %cst_42 [1] : vector<16x32xf32> to vector<16xf32>
    %156 = vector.shape_cast %155 : vector<16xf32> to vector<16x1xf32>
    %cst_43 = arith.constant 3.200000e+01 : f32
    %157 = vector.broadcast %cst_43 : f32 to vector<16x1xf32>
    %158 = arith.divf %156, %157 : vector<16x1xf32>
    %159 = vector.broadcast %151 : vector<16x1xf32> to vector<16x32xf32>
    %160 = arith.subf %147, %159 : vector<16x32xf32>
    %cst_44 = arith.constant 9.99999974E-6 : f32
    %161 = vector.broadcast %cst_44 : f32 to vector<16x1xf32>
    %162 = arith.addf %158, %161 : vector<16x1xf32>
    %163 = math.rsqrt %162 : vector<16x1xf32>
    %164 = vector.broadcast %163 : vector<16x1xf32> to vector<16x32xf32>
    %165 = arith.mulf %160, %164 : vector<16x32xf32>
    %166 = vector.broadcast %10 : vector<1x32xf32> to vector<16x32xf32>
    %167 = arith.mulf %165, %166 : vector<16x32xf32>
    %168 = vector.broadcast %11 : vector<1x32xf32> to vector<16x32xf32>
    %169 = arith.addf %167, %168 : vector<16x32xf32>
    %170 = arith.addf %111, %169 : vector<16x32xf32>
    %c0_45 = arith.constant 0 : index
    %c0_46 = arith.constant 0 : index
    %171 = vector.load %arg3[%c0_45, %c0_46] : memref<16x32xf32, #tpu.memory_space<vmem>>, vector<16x32xf32>
    tpu.vector_store %arg3[%c0_45, %c0_46], %170 {strides = array<i32>} : memref<16x32xf32, #tpu.memory_space<vmem>>, vector<16x32xf32>,
    return
  }
}

</mosaic_0001>

<llo_original>
// kernel: tpu_custom_call.1
$region0: #{tpu_custom_call.1}
  #allocation0 [shape = 'u32[]', space=smem, size = 0x4, offset = 0x4, fixed_abs, tag = 'smem constant byte address 0x4 - core index']
  #allocation1 [shape = 'u32[144,128]{1,0:T(1,128)}', space=vmem, size = 0x12000, scoped, tag = 'internal scratch']
  %s0 = inlined_call_operand.hbm [shape: f32[16,32], index: 0, kind: input, shape index: {}]
  %s1 = inlined_call_operand.hbm [shape: f32[32,224], index: 1, kind: input, shape index: {}]
  %s2 = inlined_call_operand.hbm [shape: f32[35,128], index: 2, kind: input, shape index: {}]
  %s3 = inlined_call_operand.hbm [shape: f32[16,32], index: 3, kind: output, shape index: {}]
  %s4 = sld [smem:[#allocation0]]
  $region34: #{tpu_custom_call.1} parent=0
    _
  %s6 = ssub.s32 1, %s4
  %s7 = scalar_select 0, %s6, %s4
  $region1: #{tpu_custom_call.1} parent=0
    #allocation2 [shape = 'u8[8192]{0}', space=vmem, size = 0x2000, scoped, tag = 'input window, operand 0, single buffered']
    #allocation3 [shape = 's32[1]{0}', space=sflag, size = 0x4, scoped, tag = 'scoped memory for tpu_custom_call.1']
    #allocation4 [shape = 's32[1]{0}', space=sflag, size = 0x4, scoped, tag = 'scoped memory for tpu_custom_call.1']
    #allocation5 [shape = 'u8[32768]{0}', space=vmem, size = 0x8000, scoped, tag = 'input window, operand 1, single buffered']
    #allocation6 [shape = 's32[1]{0}', space=sflag, size = 0x4, scoped, tag = 'scoped memory for tpu_custom_call.1']
    #allocation7 [shape = 'u8[20480]{0}', space=vmem, size = 0x5000, scoped, tag = 'input window, operand 2, single buffered']
    #allocation8 [shape = 'u8[8192]{0}', space=vmem, size = 0x2000, scoped, tag = 'output window, operand 0, single buffered']
    %8 = vsyncpa [#allocation3], 0
    %9 = vsyncpa [#allocation6], 0
    %10 = vsyncpa [#allocation4], 0
    // Predicated region
    $region2: #{tpu_custom_call.1} parent=1 // pred_check
      _
    $region3: #{tpu_custom_call.1} parent=1 // pred_check_branch
      %12 = sbr.rel (0) target = $region5
    $region4: #{tpu_custom_call.1} parent=1 // pred_region
      %s14 = ssub.s32 256, 256
      %15 = vsyncadd [#allocation3], %s14
      %s16 = sshll.u32 [#allocation2], 4
      %s17 = int_to_ptr.vmem [resolvable:$true] %s16
      %22 = dma.hbm_to_vmem [thread:$0]  %s0, 256, %s17, [#allocation3], 128, 128, 8
    $region5: #{tpu_custom_call.1} parent=1 // pred_fallthru
      _
    // Predicated region
    $region6: #{tpu_custom_call.1} parent=1 // pred_check
      _
    $region7: #{tpu_custom_call.1} parent=1 // pred_check_branch
      %24 = sbr.rel (0) target = $region9
    $region8: #{tpu_custom_call.1} parent=1 // pred_region
      %s26 = ssub.s32 1024, 1024
      %27 = vsyncadd [#allocation6], %s26
      %s28 = sshll.u32 [#allocation5], 4
      %s29 = int_to_ptr.vmem [resolvable:$true] %s28
      %34 = dma.hbm_to_vmem [thread:$0]  %s1, 1024, %s29, [#allocation6], 256, 256, 16
    $region9: #{tpu_custom_call.1} parent=1 // pred_fallthru
      _
    // Predicated region
    $region10: #{tpu_custom_call.1} parent=1 // pred_check
      _
    $region11: #{tpu_custom_call.1} parent=1 // pred_check_branch
      %36 = sbr.rel (0) target = $region13
    $region12: #{tpu_custom_call.1} parent=1 // pred_region
      %s38 = ssub.s32 640, 640
      %39 = vsyncadd [#allocation6], %s38
      %s40 = sshll.u32 [#allocation7], 4
      %s41 = int_to_ptr.vmem [resolvable:$true] %s40
      %46 = dma.hbm_to_vmem [thread:$0]  %s2, 640, %s41, [#allocation6], 128, 128, 8
    $region13: #{tpu_custom_call.1} parent=1 // pred_fallthru
      _
    // Predicated region
    $region14: #{tpu_custom_call.1} parent=1 // pred_check
      _
    $region15: #{tpu_custom_call.1} parent=1 // pred_check_branch
      %48 = sbr.rel (0) target = $region17
    $region16: #{tpu_custom_call.1} parent=1 // pred_region
      %49 = dma.done [#allocation3], 256
    $region17: #{tpu_custom_call.1} parent=1 // pred_fallthru
      _
    // Predicated region
    $region18: #{tpu_custom_call.1} parent=1 // pred_check
      _
    $region19: #{tpu_custom_call.1} parent=1 // pred_check_branch
      %51 = sbr.rel (0) target = $region21
    $region20: #{tpu_custom_call.1} parent=1 // pred_region
      %52 = dma.done [#allocation6], 1024
    $region21: #{tpu_custom_call.1} parent=1 // pred_fallthru
      _
    // Predicated region
    $region22: #{tpu_custom_call.1} parent=1 // pred_check
      _
    $region23: #{tpu_custom_call.1} parent=1 // pred_check_branch
      %54 = sbr.rel (0) target = $region25
    $region24: #{tpu_custom_call.1} parent=1 // pred_region
      %55 = dma.done [#allocation6], 640
    $region25: #{tpu_custom_call.1} parent=1 // pred_fallthru
      _
    %v56 = vld [vmem:[#allocation2] sm:$0xff]
    %v57 = vld [vmem:[#allocation2 + $0x8] sm:$0xff]
    %v58 = vld [vmem:[#allocation5] sm:$0xff]
    %v59 = vld [vmem:[#allocation5 + $0x8] sm:$0xff]
    %v60 = vld [vmem:[#allocation5 + $0x10] sm:$0xff]
    %v61 = vld [vmem:[#allocation5 + $0x18] sm:$0xff]
    %v62 = vld [vmem:[#allocation5 + $0x20] sm:$0xff]
    %v63 = vld [vmem:[#allocation5 + $0x28] sm:$0xff]
    %v64 = vld [vmem:[#allocation5 + $0x30] sm:$0xff]
    %v65 = vld [vmem:[#allocation5 + $0x38] sm:$0xff]
    %v66 = vld [vmem:[#allocation7] sm:$0xff]
    %v67 = vld [vmem:[#allocation7 + $0x8] sm:$0xff]
    %v68 = vld [vmem:[#allocation7 + $0x10] sm:$0xff]
    %v69 = vld [vmem:[#allocation7 + $0x18] sm:$0xff]
    %v70 = vld [vmem:[#allocation7 + $0x20] sm:$0x7]
    %v71 = vlaneseq
    %v72 = vshrl.u32 %v71, 7
    %v73 = vsub.s32 0, %v72
    %v74 = vrot.slane %v70, %v73
    %vm75 = vcmask 261120
    %v77 = vsel %vm75, %v56, 0
    %v80 = vsel %vm75, %v57, 0
    %82 = vmatprep.subr.mxu0 0.0
    %83 = vmatpush1.msra.mxu0 0.0
    %84 = vmatprep.subr.mxu0 0.0
    %85 = vmatpush1.msra.mxu0 0.0
    %86 = vmatprep.subr.mxu0 0.0
    %87 = vmatpush1.msra.mxu0 0.0
    %88 = vmatprep.subr.mxu0 0.0
    %89 = vmatpush1.msra.mxu0 0.0
    %90 = vmatprep.subr.mxu0 0.0
    %91 = vmatpush1.msra.mxu0 0.0
    %92 = vmatprep.subr.mxu0 0.0
    %93 = vmatpush1.msra.mxu0 0.0
    %94 = vmatprep.subr.mxu0 0.0
    %95 = vmatpush1.msra.mxu0 0.0
    %96 = vmatprep.subr.mxu0 0.0
    %97 = vmatpush1.msra.mxu0 0.0
    %98 = vmatprep.subr.mxu0 0.0
    %99 = vmatpush1.msra.mxu0 0.0
    %100 = vmatprep.subr.mxu0 0.0
    %101 = vmatpush1.msra.mxu0 0.0
    %102 = vmatprep.subr.mxu0 0.0
    %103 = vmatpush1.msra.mxu0 0.0
    %104 = vmatprep.subr.mxu0 0.0
    %105 = vmatpush1.msra.mxu0 0.0
    %106 = vmatprep.subr.mxu0 0.0
    %107 = vmatpush1.msra.mxu0 %v64
    %108 = vmatprep.subr.mxu0 0.0
    %109 = vmatpush1.msra.mxu0 %v62
    %110 = vmatprep.subr.mxu0 0.0
    %111 = vmatpush1.msra.mxu0 %v60
    %112 = vmatprep.subr.mxu0 0.0
    %113 = vmatpush1.msra.mxu0 %v58
    %114 = vmatprep.subr.mxu0 0.0
    %115 = vmatpush2.msra.mxu0 0.0
    %116 = vmatprep.subr.mxu0 0.0
    %117 = vmatpush2.msra.mxu0 0.0
    %118 = vmatprep.subr.mxu0 0.0
    %119 = vmatpush2.msra.mxu0 0.0
    %120 = vmatprep.subr.mxu0 0.0
    %121 = vmatpush2.msra.mxu0 0.0
    %122 = vmatprep.subr.mxu0 0.0
    %123 = vmatpush2.msra.mxu0 0.0
    %124 = vmatprep.subr.mxu0 0.0
    %125 = vmatpush2.msra.mxu0 0.0
    %126 = vmatprep.subr.mxu0 0.0
    %127 = vmatpush2.msra.mxu0 0.0
    %128 = vmatprep.subr.mxu0 0.0
    %129 = vmatpush2.msra.mxu0 0.0
    %130 = vmatprep.subr.mxu0 0.0
    %131 = vmatpush2.msra.mxu0 0.0
    %132 = vmatprep.subr.mxu0 0.0
    %133 = vmatpush2.msra.mxu0 0.0
    %134 = vmatprep.subr.mxu0 0.0
    %135 = vmatpush2.msra.mxu0 0.0
    %136 = vmatprep.subr.mxu0 0.0
    %137 = vmatpush2.msra.mxu0 0.0
    %138 = vmatprep.subr.mxu0 0.0
    %139 = vmatpush2.msra.mxu0 0.0
    %140 = vmatprep.subr.mxu0 0.0
    %141 = vmatpush2.msra.mxu0 0.0
    %142 = vmatprep.subr.mxu0 0.0
    %143 = vmatpush2.msra.mxu0 0.0
    %144 = vmatprep.subr.mxu0 0.0
    %145 = vmatpush2.msra.mxu0 0.0
    %146 = vmatprep.mubr.f32.mxu0 0.0
    %147 = vmatmul.mubr.f32.gmra.mxu0 %v77
    %v148 = vpop.f32.mrf.mxu0
    %v149 = vadd.f32 %v74, %v148
    %v150 = vpop.f32.mrf.mxu0
    %151 = vmatprep.mubr.f32.mxu0 0.0
    %152 = vmatmul.mubr.f32.gmra.mxu0 %v80
    %v153 = vpop.f32.mrf.mxu0
    %v154 = vadd.f32 %v74, %v153
    %v155 = vpop.f32.mrf.mxu0
    %156 = vdwg.mxu0
    %158 = vrot.lane.b32.xlu0 %v149, 96
    %v159 = vpop.permute.xlu0 %158
    %vm160 = vcmask 64512
    %v161 = vsel %vm160, %v149, 0
    %v163 = vsel %vm160, %v159, 0
    %165 = vmatprep.subr.mxu0 0.0
    %166 = vmatpush1.xpose.msra.mxu0 0.0
    %167 = vmatprep.subr.mxu0 0.0
    %168 = vmatpush1.xpose.msra.mxu0 0.0
    %169 = vmatprep.subr.mxu0 0.0
    %170 = vmatpush1.xpose.msra.mxu0 0.0
    %171 = vmatprep.subr.mxu0 0.0
    %172 = vmatpush1.xpose.msra.mxu0 0.0
    %173 = vmatprep.subr.mxu0 0.0
    %174 = vmatpush1.xpose.msra.mxu0 0.0
    %175 = vmatprep.subr.mxu0 0.0
    %176 = vmatpush1.xpose.msra.mxu0 0.0
    %177 = vmatprep.subr.mxu0 0.0
    %178 = vmatpush1.xpose.msra.mxu0 0.0
    %179 = vmatprep.subr.mxu0 0.0
    %180 = vmatpush1.xpose.msra.mxu0 0.0
    %181 = vmatprep.subr.mxu0 0.0
    %182 = vmatpush1.xpose.msra.mxu0 0.0
    %183 = vmatprep.subr.mxu0 0.0
    %184 = vmatpush1.xpose.msra.mxu0 0.0
    %185 = vmatprep.subr.mxu0 0.0
    %186 = vmatpush1.xpose.msra.mxu0 0.0
    %187 = vmatprep.subr.mxu0 0.0
    %188 = vmatpush1.xpose.msra.mxu0 0.0
    %189 = vmatprep.subr.mxu0 0.0
    %190 = vmatpush1.xpose.msra.mxu0 0.0
    %191 = vmatprep.subr.mxu0 0.0
    %192 = vmatpush1.xpose.msra.mxu0 0.0
    %193 = vmatprep.subr.mxu0 0.0
    %194 = vmatpush1.xpose.msra.mxu0 0.0
    %195 = vmatprep.subr.mxu0 0.0
    %196 = vmatpush1.xpose.msra.mxu0 %v163
    %197 = vmatprep.subr.mxu0 0.0
    %198 = vmatpush2.xpose.msra.mxu0 0.0
    %199 = vmatprep.subr.mxu0 0.0
    %200 = vmatpush2.xpose.msra.mxu0 0.0
    %201 = vmatprep.subr.mxu0 0.0
    %202 = vmatpush2.xpose.msra.mxu0 0.0
    %203 = vmatprep.subr.mxu0 0.0
    %204 = vmatpush2.xpose.msra.mxu0 0.0
    %205 = vmatprep.subr.mxu0 0.0
    %206 = vmatpush2.xpose.msra.mxu0 0.0
    %207 = vmatprep.subr.mxu0 0.0
    %208 = vmatpush2.xpose.msra.mxu0 0.0
    %209 = vmatprep.subr.mxu0 0.0
    %210 = vmatpush2.xpose.msra.mxu0 0.0
    %211 = vmatprep.subr.mxu0 0.0
    %212 = vmatpush2.xpose.msra.mxu0 0.0
    %213 = vmatprep.subr.mxu0 0.0
    %214 = vmatpush2.xpose.msra.mxu0 0.0
    %215 = vmatprep.subr.mxu0 0.0
    %216 = vmatpush2.xpose.msra.mxu0 0.0
    %217 = vmatprep.subr.mxu0 0.0
    %218 = vmatpush2.xpose.msra.mxu0 0.0
    %219 = vmatprep.subr.mxu0 0.0
    %220 = vmatpush2.xpose.msra.mxu0 0.0
    %221 = vmatprep.subr.mxu0 0.0
    %222 = vmatpush2.xpose.msra.mxu0 0.0
    %223 = vmatprep.subr.mxu0 0.0
    %224 = vmatpush2.xpose.msra.mxu0 0.0
    %225 = vmatprep.subr.mxu0 0.0
    %226 = vmatpush2.xpose.msra.mxu0 0.0
    %227 = vmatprep.subr.mxu0 0.0
    %228 = vmatpush2.xpose.msra.mxu0 0.0
    %229 = vmatprep.mubr.f32.mxu0 0.0
    %230 = vmatmul.mubr.f32.gmra.mxu0 %v161
    %v231 = vpop.f32.mrf.mxu0
    %v232 = vadd.f32 0.0, %v231
    %v233 = vpop.f32.mrf.mxu0
    %234 = vdwg.mxu0
    %236 = vrot.lane.b32.xlu0 %v154, 96
    %v237 = vpop.permute.xlu0 %236
    %v238 = vsel %vm160, %v154, 0
    %v240 = vsel %vm160, %v237, 0
    %242 = vmatprep.subr.mxu0 0.0
    %243 = vmatpush1.xpose.msra.mxu0 0.0
    %244 = vmatprep.subr.mxu0 0.0
    %245 = vmatpush1.xpose.msra.mxu0 0.0
    %246 = vmatprep.subr.mxu0 0.0
    %247 = vmatpush1.xpose.msra.mxu0 0.0
    %248 = vmatprep.subr.mxu0 0.0
    %249 = vmatpush1.xpose.msra.mxu0 0.0
    %250 = vmatprep.subr.mxu0 0.0
    %251 = vmatpush1.xpose.msra.mxu0 0.0
    %252 = vmatprep.subr.mxu0 0.0
    %253 = vmatpush1.xpose.msra.mxu0 0.0
    %254 = vmatprep.subr.mxu0 0.0
    %255 = vmatpush1.xpose.msra.mxu0 0.0
    %256 = vmatprep.subr.mxu0 0.0
    %257 = vmatpush1.xpose.msra.mxu0 0.0
    %258 = vmatprep.subr.mxu0 0.0
    %259 = vmatpush1.xpose.msra.mxu0 0.0
    %260 = vmatprep.subr.mxu0 0.0
    %261 = vmatpush1.xpose.msra.mxu0 0.0
    %262 = vmatprep.subr.mxu0 0.0
    %263 = vmatpush1.xpose.msra.mxu0 0.0
    %264 = vmatprep.subr.mxu0 0.0
    %265 = vmatpush1.xpose.msra.mxu0 0.0
    %266 = vmatprep.subr.mxu0 0.0
    %267 = vmatpush1.xpose.msra.mxu0 0.0
    %268 = vmatprep.subr.mxu0 0.0
    %269 = vmatpush1.xpose.msra.mxu0 0.0
    %270 = vmatprep.subr.mxu0 0.0
    %271 = vmatpush1.xpose.msra.mxu0 0.0
    %272 = vmatprep.subr.mxu0 0.0
    %273 = vmatpush1.xpose.msra.mxu0 %v240
    %274 = vmatprep.subr.mxu0 0.0
    %275 = vmatpush2.xpose.msra.mxu0 0.0
    %276 = vmatprep.subr.mxu0 0.0
    %277 = vmatpush2.xpose.msra.mxu0 0.0
    %278 = vmatprep.subr.mxu0 0.0
    %279 = vmatpush2.xpose.msra.mxu0 0.0
    %280 = vmatprep.subr.mxu0 0.0
    %281 = vmatpush2.xpose.msra.mxu0 0.0
    %282 = vmatprep.subr.mxu0 0.0
    %283 = vmatpush2.xpose.msra.mxu0 0.0
    %284 = vmatprep.subr.mxu0 0.0
    %285 = vmatpush2.xpose.msra.mxu0 0.0
    %286 = vmatprep.subr.mxu0 0.0
    %287 = vmatpush2.xpose.msra.mxu0 0.0
    %288 = vmatprep.subr.mxu0 0.0
    %289 = vmatpush2.xpose.msra.mxu0 0.0
    %290 = vmatprep.subr.mxu0 0.0
    %291 = vmatpush2.xpose.msra.mxu0 0.0
    %292 = vmatprep.subr.mxu0 0.0
    %293 = vmatpush2.xpose.msra.mxu0 0.0
    %294 = vmatprep.subr.mxu0 0.0
    %295 = vmatpush2.xpose.msra.mxu0 0.0
    %296 = vmatprep.subr.mxu0 0.0
    %297 = vmatpush2.xpose.msra.mxu0 0.0
    %298 = vmatprep.subr.mxu0 0.0
    %299 = vmatpush2.xpose.msra.mxu0 0.0
    %300 = vmatprep.subr.mxu0 0.0
    %301 = vmatpush2.xpose.msra.mxu0 0.0
    %302 = vmatprep.subr.mxu0 0.0
    %303 = vmatpush2.xpose.msra.mxu0 0.0
    %304 = vmatprep.subr.mxu0 0.0
    %305 = vmatpush2.xpose.msra.mxu0 0.0
    %306 = vmatprep.mubr.f32.mxu0 0.0
    %307 = vmatmul.mubr.f32.gmra.mxu0 %v238
    %v308 = vpop.f32.mrf.mxu0
    %v309 = vadd.f32 0.0, %v308
    %v310 = vpop.f32.mrf.mxu0
    %311 = vdwg.mxu0
    %v312 = vmul.f32 %v232, 0.35355338
    %v313 = vmul.f32 %v309, 0.35355338
    %v314 = vsel %vm160, %v312, -inf
    %315 = vmax.xlane.f32.xlu0 %v314
    %v316 = vpop.xlane.xlu0 %315
    %v317 = vsel %vm160, %v313, -inf
    %318 = vmax.xlane.f32.xlu0 %v317
    %v319 = vpop.xlane.xlu0 %318
    %v320 = vsub.f32 %v312, %v316
    %v321 = vsub.f32 %v313, %v319
    %v322 = vmul.f32 %v320, 1.442695
    %v323 = vpow.pop %v322
    %v324 = vmul.f32 %v321, 1.442695
    %v325 = vpow.pop %v324
    %v326 = vsel %vm160, %v323, 0.0
    %327 = vadd.xlane.f32.xlu0 %v326
    %v328 = vpop.xlane.xlu0 %327
    %v329 = vsel %vm160, %v325, 0.0
    %330 = vadd.xlane.f32.xlu0 %v329
    %v331 = vpop.xlane.xlu0 %330
    %v332 = vrcp.pop %v328
    %v333 = vmul.f32 %v323, %v332
    %v334 = vrcp.pop %v331
    %v335 = vmul.f32 %v325, %v334
    %336 = vrot.lane.b32.xlu0 %v149, 64
    %v337 = vpop.permute.xlu0 %336
    %v340 = vsel %vm160, %v333, 0
    %342 = vmatprep.subr.mxu0 0.0
    %343 = vmatpush1.msra.mxu0 0.0
    %344 = vmatprep.subr.mxu0 0.0
    %345 = vmatpush1.msra.mxu0 0.0
    %346 = vmatprep.subr.mxu0 0.0
    %347 = vmatpush1.msra.mxu0 0.0
    %348 = vmatprep.subr.mxu0 0.0
    %349 = vmatpush1.msra.mxu0 0.0
    %350 = vmatprep.subr.mxu0 0.0
    %351 = vmatpush1.msra.mxu0 0.0
    %352 = vmatprep.subr.mxu0 0.0
    %353 = vmatpush1.msra.mxu0 0.0
    %354 = vmatprep.subr.mxu0 0.0
    %355 = vmatpush1.msra.mxu0 0.0
    %356 = vmatprep.subr.mxu0 0.0
    %357 = vmatpush1.msra.mxu0 0.0
    %358 = vmatprep.subr.mxu0 0.0
    %359 = vmatpush1.msra.mxu0 0.0
    %360 = vmatprep.subr.mxu0 0.0
    %361 = vmatpush1.msra.mxu0 0.0
    %362 = vmatprep.subr.mxu0 0.0
    %363 = vmatpush1.msra.mxu0 0.0
    %364 = vmatprep.subr.mxu0 0.0
    %365 = vmatpush1.msra.mxu0 0.0
    %366 = vmatprep.subr.mxu0 0.0
    %367 = vmatpush1.msra.mxu0 0.0
    %368 = vmatprep.subr.mxu0 0.0
    %369 = vmatpush1.msra.mxu0 0.0
    %370 = vmatprep.subr.mxu0 0.0
    %371 = vmatpush1.msra.mxu0 0.0
    %372 = vmatprep.subr.mxu0 0.0
    %373 = vmatpush1.msra.mxu0 %v337
    %374 = vmatprep.subr.mxu0 0.0
    %375 = vmatpush2.msra.mxu0 0.0
    %376 = vmatprep.subr.mxu0 0.0
    %377 = vmatpush2.msra.mxu0 0.0
    %378 = vmatprep.subr.mxu0 0.0
    %379 = vmatpush2.msra.mxu0 0.0
    %380 = vmatprep.subr.mxu0 0.0
    %381 = vmatpush2.msra.mxu0 0.0
    %382 = vmatprep.subr.mxu0 0.0
    %383 = vmatpush2.msra.mxu0 0.0
    %384 = vmatprep.subr.mxu0 0.0
    %385 = vmatpush2.msra.mxu0 0.0
    %386 = vmatprep.subr.mxu0 0.0
    %387 = vmatpush2.msra.mxu0 0.0
    %388 = vmatprep.subr.mxu0 0.0
    %389 = vmatpush2.msra.mxu0 0.0
    %390 = vmatprep.subr.mxu0 0.0
    %391 = vmatpush2.msra.mxu0 0.0
    %392 = vmatprep.subr.mxu0 0.0
    %393 = vmatpush2.msra.mxu0 0.0
    %394 = vmatprep.subr.mxu0 0.0
    %395 = vmatpush2.msra.mxu0 0.0
    %396 = vmatprep.subr.mxu0 0.0
    %397 = vmatpush2.msra.mxu0 0.0
    %398 = vmatprep.subr.mxu0 0.0
    %399 = vmatpush2.msra.mxu0 0.0
    %400 = vmatprep.subr.mxu0 0.0
    %401 = vmatpush2.msra.mxu0 0.0
    %402 = vmatprep.subr.mxu0 0.0
    %403 = vmatpush2.msra.mxu0 0.0
    %404 = vmatprep.subr.mxu0 0.0
    %405 = vmatpush2.msra.mxu0 0.0
    %406 = vmatprep.mubr.f32.mxu0 0.0
    %407 = vmatmul.mubr.f32.gmra.mxu0 %v340
    %v408 = vpop.f32.mrf.mxu0
    %v409 = vadd.f32 0.0, %v408
    %v410 = vpop.f32.mrf.mxu0
    %411 = vdwg.mxu0
    %412 = vrot.lane.b32.xlu0 %v154, 64
    %v413 = vpop.permute.xlu0 %412
    %v416 = vsel %vm160, %v335, 0
    %418 = vmatprep.subr.mxu0 0.0
    %419 = vmatpush1.msra.mxu0 0.0
    %420 = vmatprep.subr.mxu0 0.0
    %421 = vmatpush1.msra.mxu0 0.0
    %422 = vmatprep.subr.mxu0 0.0
    %423 = vmatpush1.msra.mxu0 0.0
    %424 = vmatprep.subr.mxu0 0.0
    %425 = vmatpush1.msra.mxu0 0.0
    %426 = vmatprep.subr.mxu0 0.0
    %427 = vmatpush1.msra.mxu0 0.0
    %428 = vmatprep.subr.mxu0 0.0
    %429 = vmatpush1.msra.mxu0 0.0
    %430 = vmatprep.subr.mxu0 0.0
    %431 = vmatpush1.msra.mxu0 0.0
    %432 = vmatprep.subr.mxu0 0.0
    %433 = vmatpush1.msra.mxu0 0.0
    %434 = vmatprep.subr.mxu0 0.0
    %435 = vmatpush1.msra.mxu0 0.0
    %436 = vmatprep.subr.mxu0 0.0
    %437 = vmatpush1.msra.mxu0 0.0
    %438 = vmatprep.subr.mxu0 0.0
    %439 = vmatpush1.msra.mxu0 0.0
    %440 = vmatprep.subr.mxu0 0.0
    %441 = vmatpush1.msra.mxu0 0.0
    %442 = vmatprep.subr.mxu0 0.0
    %443 = vmatpush1.msra.mxu0 0.0
    %444 = vmatprep.subr.mxu0 0.0
    %445 = vmatpush1.msra.mxu0 0.0
    %446 = vmatprep.subr.mxu0 0.0
    %447 = vmatpush1.msra.mxu0 0.0
    %448 = vmatprep.subr.mxu0 0.0
    %449 = vmatpush1.msra.mxu0 %v413
    %450 = vmatprep.subr.mxu0 0.0
    %451 = vmatpush2.msra.mxu0 0.0
    %452 = vmatprep.subr.mxu0 0.0
    %453 = vmatpush2.msra.mxu0 0.0
    %454 = vmatprep.subr.mxu0 0.0
    %455 = vmatpush2.msra.mxu0 0.0
    %456 = vmatprep.subr.mxu0 0.0
    %457 = vmatpush2.msra.mxu0 0.0
    %458 = vmatprep.subr.mxu0 0.0
    %459 = vmatpush2.msra.mxu0 0.0
    %460 = vmatprep.subr.mxu0 0.0
    %461 = vmatpush2.msra.mxu0 0.0
    %462 = vmatprep.subr.mxu0 0.0
    %463 = vmatpush2.msra.mxu0 0.0
    %464 = vmatprep.subr.mxu0 0.0
    %465 = vmatpush2.msra.mxu0 0.0
    %466 = vmatprep.subr.mxu0 0.0
    %467 = vmatpush2.msra.mxu0 0.0
    %468 = vmatprep.subr.mxu0 0.0
    %469 = vmatpush2.msra.mxu0 0.0
    %470 = vmatprep.subr.mxu0 0.0
    %471 = vmatpush2.msra.mxu0 0.0
    %472 = vmatprep.subr.mxu0 0.0
    %473 = vmatpush2.msra.mxu0 0.0
    %474 = vmatprep.subr.mxu0 0.0
    %475 = vmatpush2.msra.mxu0 0.0
    %476 = vmatprep.subr.mxu0 0.0
    %477 = vmatpush2.msra.mxu0 0.0
    %478 = vmatprep.subr.mxu0 0.0
    %479 = vmatpush2.msra.mxu0 0.0
    %480 = vmatprep.subr.mxu0 0.0
    %481 = vmatpush2.msra.mxu0 0.0
    %482 = vmatprep.mubr.f32.mxu0 0.0
    %483 = vmatmul.mubr.f32.gmra.mxu0 %v416
    %v484 = vpop.f32.mrf.mxu0
    %v485 = vadd.f32 0.0, %v484
    %v486 = vpop.f32.mrf.mxu0
    %487 = vdwg.mxu0
    %488 = vrot.lane.b32.xlu0 %v149, 120
    %v489 = vpop.permute.xlu0 %488
    %490 = vrot.lane.b32.xlu0 %v149, 88
    %v491 = vpop.permute.xlu0 %490
    %v492 = vsel %vm160, %v489, 0
    %v494 = vsel %vm160, %v491, 0
    %496 = vmatprep.subr.mxu0 0.0
    %497 = vmatpush1.xpose.msra.mxu0 0.0
    %498 = vmatprep.subr.mxu0 0.0
    %499 = vmatpush1.xpose.msra.mxu0 0.0
    %500 = vmatprep.subr.mxu0 0.0
    %501 = vmatpush1.xpose.msra.mxu0 0.0
    %502 = vmatprep.subr.mxu0 0.0
    %503 = vmatpush1.xpose.msra.mxu0 0.0
    %504 = vmatprep.subr.mxu0 0.0
    %505 = vmatpush1.xpose.msra.mxu0 0.0
    %506 = vmatprep.subr.mxu0 0.0
    %507 = vmatpush1.xpose.msra.mxu0 0.0
    %508 = vmatprep.subr.mxu0 0.0
    %509 = vmatpush1.xpose.msra.mxu0 0.0
    %510 = vmatprep.subr.mxu0 0.0
    %511 = vmatpush1.xpose.msra.mxu0 0.0
    %512 = vmatprep.subr.mxu0 0.0
    %513 = vmatpush1.xpose.msra.mxu0 0.0
    %514 = vmatprep.subr.mxu0 0.0
    %515 = vmatpush1.xpose.msra.mxu0 0.0
    %516 = vmatprep.subr.mxu0 0.0
    %517 = vmatpush1.xpose.msra.mxu0 0.0
    %518 = vmatprep.subr.mxu0 0.0
    %519 = vmatpush1.xpose.msra.mxu0 0.0
    %520 = vmatprep.subr.mxu0 0.0
    %521 = vmatpush1.xpose.msra.mxu0 0.0
    %522 = vmatprep.subr.mxu0 0.0
    %523 = vmatpush1.xpose.msra.mxu0 0.0
    %524 = vmatprep.subr.mxu0 0.0
    %525 = vmatpush1.xpose.msra.mxu0 0.0
    %526 = vmatprep.subr.mxu0 0.0
    %527 = vmatpush1.xpose.msra.mxu0 %v494
    %528 = vmatprep.subr.mxu0 0.0
    %529 = vmatpush2.xpose.msra.mxu0 0.0
    %530 = vmatprep.subr.mxu0 0.0
    %531 = vmatpush2.xpose.msra.mxu0 0.0
    %532 = vmatprep.subr.mxu0 0.0
    %533 = vmatpush2.xpose.msra.mxu0 0.0
    %534 = vmatprep.subr.mxu0 0.0
    %535 = vmatpush2.xpose.msra.mxu0 0.0
    %536 = vmatprep.subr.mxu0 0.0
    %537 = vmatpush2.xpose.msra.mxu0 0.0
    %538 = vmatprep.subr.mxu0 0.0
    %539 = vmatpush2.xpose.msra.mxu0 0.0
    %540 = vmatprep.subr.mxu0 0.0
    %541 = vmatpush2.xpose.msra.mxu0 0.0
    %542 = vmatprep.subr.mxu0 0.0
    %543 = vmatpush2.xpose.msra.mxu0 0.0
    %544 = vmatprep.subr.mxu0 0.0
    %545 = vmatpush2.xpose.msra.mxu0 0.0
    %546 = vmatprep.subr.mxu0 0.0
    %547 = vmatpush2.xpose.msra.mxu0 0.0
    %548 = vmatprep.subr.mxu0 0.0
    %549 = vmatpush2.xpose.msra.mxu0 0.0
    %550 = vmatprep.subr.mxu0 0.0
    %551 = vmatpush2.xpose.msra.mxu0 0.0
    %552 = vmatprep.subr.mxu0 0.0
    %553 = vmatpush2.xpose.msra.mxu0 0.0
    %554 = vmatprep.subr.mxu0 0.0
    %555 = vmatpush2.xpose.msra.mxu0 0.0
    %556 = vmatprep.subr.mxu0 0.0
    %557 = vmatpush2.xpose.msra.mxu0 0.0
    %558 = vmatprep.subr.mxu0 0.0
    %559 = vmatpush2.xpose.msra.mxu0 0.0
    %560 = vmatprep.mubr.f32.mxu0 0.0
    %561 = vmatmul.mubr.f32.gmra.mxu0 %v492
    %v562 = vpop.f32.mrf.mxu0
    %v563 = vadd.f32 0.0, %v562
    %v564 = vpop.f32.mrf.mxu0
    %565 = vdwg.mxu0
    %566 = vrot.lane.b32.xlu0 %v154, 120
    %v567 = vpop.permute.xlu0 %566
    %568 = vrot.lane.b32.xlu0 %v154, 88
    %v569 = vpop.permute.xlu0 %568
    %v570 = vsel %vm160, %v567, 0
    %v572 = vsel %vm160, %v569, 0
    %574 = vmatprep.subr.mxu0 0.0
    %575 = vmatpush1.xpose.msra.mxu0 0.0
    %576 = vmatprep.subr.mxu0 0.0
    %577 = vmatpush1.xpose.msra.mxu0 0.0
    %578 = vmatprep.subr.mxu0 0.0
    %579 = vmatpush1.xpose.msra.mxu0 0.0
    %580 = vmatprep.subr.mxu0 0.0
    %581 = vmatpush1.xpose.msra.mxu0 0.0
    %582 = vmatprep.subr.mxu0 0.0
    %583 = vmatpush1.xpose.msra.mxu0 0.0
    %584 = vmatprep.subr.mxu0 0.0
    %585 = vmatpush1.xpose.msra.mxu0 0.0
    %586 = vmatprep.subr.mxu0 0.0
    %587 = vmatpush1.xpose.msra.mxu0 0.0
    %588 = vmatprep.subr.mxu0 0.0
    %589 = vmatpush1.xpose.msra.mxu0 0.0
    %590 = vmatprep.subr.mxu0 0.0
    %591 = vmatpush1.xpose.msra.mxu0 0.0
    %592 = vmatprep.subr.mxu0 0.0
    %593 = vmatpush1.xpose.msra.mxu0 0.0
    %594 = vmatprep.subr.mxu0 0.0
    %595 = vmatpush1.xpose.msra.mxu0 0.0
    %596 = vmatprep.subr.mxu0 0.0
    %597 = vmatpush1.xpose.msra.mxu0 0.0
    %598 = vmatprep.subr.mxu0 0.0
    %599 = vmatpush1.xpose.msra.mxu0 0.0
    %600 = vmatprep.subr.mxu0 0.0
    %601 = vmatpush1.xpose.msra.mxu0 0.0
    %602 = vmatprep.subr.mxu0 0.0
    %603 = vmatpush1.xpose.msra.mxu0 0.0
    %604 = vmatprep.subr.mxu0 0.0
    %605 = vmatpush1.xpose.msra.mxu0 %v572
    %606 = vmatprep.subr.mxu0 0.0
    %607 = vmatpush2.xpose.msra.mxu0 0.0
    %608 = vmatprep.subr.mxu0 0.0
    %609 = vmatpush2.xpose.msra.mxu0 0.0
    %610 = vmatprep.subr.mxu0 0.0
    %611 = vmatpush2.xpose.msra.mxu0 0.0
    %612 = vmatprep.subr.mxu0 0.0
    %613 = vmatpush2.xpose.msra.mxu0 0.0
    %614 = vmatprep.subr.mxu0 0.0
    %615 = vmatpush2.xpose.msra.mxu0 0.0
    %616 = vmatprep.subr.mxu0 0.0
    %617 = vmatpush2.xpose.msra.mxu0 0.0
    %618 = vmatprep.subr.mxu0 0.0
    %619 = vmatpush2.xpose.msra.mxu0 0.0
    %620 = vmatprep.subr.mxu0 0.0
    %621 = vmatpush2.xpose.msra.mxu0 0.0
    %622 = vmatprep.subr.mxu0 0.0
    %623 = vmatpush2.xpose.msra.mxu0 0.0
    %624 = vmatprep.subr.mxu0 0.0
    %625 = vmatpush2.xpose.msra.mxu0 0.0
    %626 = vmatprep.subr.mxu0 0.0
    %627 = vmatpush2.xpose.msra.mxu0 0.0
    %628 = vmatprep.subr.mxu0 0.0
    %629 = vmatpush2.xpose.msra.mxu0 0.0
    %630 = vmatprep.subr.mxu0 0.0
    %631 = vmatpush2.xpose.msra.mxu0 0.0
    %632 = vmatprep.subr.mxu0 0.0
    %633 = vmatpush2.xpose.msra.mxu0 0.0
    %634 = vmatprep.subr.mxu0 0.0
    %635 = vmatpush2.xpose.msra.mxu0 0.0
    %636 = vmatprep.subr.mxu0 0.0
    %637 = vmatpush2.xpose.msra.mxu0 0.0
    %638 = vmatprep.mubr.f32.mxu0 0.0
    %639 = vmatmul.mubr.f32.gmra.mxu0 %v570
    %v640 = vpop.f32.mrf.mxu0
    %v641 = vadd.f32 0.0, %v640
    %v642 = vpop.f32.mrf.mxu0
    %643 = vdwg.mxu0
    %v644 = vmul.f32 %v563, 0.35355338
    %v645 = vmul.f32 %v641, 0.35355338
    %v646 = vsel %vm160, %v644, -inf
    %647 = vmax.xlane.f32.xlu0 %v646
    %v648 = vpop.xlane.xlu0 %647
    %v649 = vsel %vm160, %v645, -inf
    %650 = vmax.xlane.f32.xlu0 %v649
    %v651 = vpop.xlane.xlu0 %650
    %v652 = vsub.f32 %v644, %v648
    %v653 = vsub.f32 %v645, %v651
    %v654 = vmul.f32 %v652, 1.442695
    %v655 = vpow.pop %v654
    %v656 = vmul.f32 %v653, 1.442695
    %v657 = vpow.pop %v656
    %v658 = vsel %vm160, %v655, 0.0
    %659 = vadd.xlane.f32.xlu0 %v658
    %v660 = vpop.xlane.xlu0 %659
    %v661 = vsel %vm160, %v657, 0.0
    %662 = vadd.xlane.f32.xlu0 %v661
    %v663 = vpop.xlane.xlu0 %662
    %v664 = vrcp.pop %v660
    %v665 = vmul.f32 %v655, %v664
    %v666 = vrcp.pop %v663
    %v667 = vmul.f32 %v657, %v666
    %668 = vrot.lane.b32.xlu0 %v149, 56
    %v669 = vpop.permute.xlu0 %668
    %v672 = vsel %vm160, %v665, 0
    %674 = vmatprep.subr.mxu0 0.0
    %675 = vmatpush1.msra.mxu0 0.0
    %676 = vmatprep.subr.mxu0 0.0
    %677 = vmatpush1.msra.mxu0 0.0
    %678 = vmatprep.subr.mxu0 0.0
    %679 = vmatpush1.msra.mxu0 0.0
    %680 = vmatprep.subr.mxu0 0.0
    %681 = vmatpush1.msra.mxu0 0.0
    %682 = vmatprep.subr.mxu0 0.0
    %683 = vmatpush1.msra.mxu0 0.0
    %684 = vmatprep.subr.mxu0 0.0
    %685 = vmatpush1.msra.mxu0 0.0
    %686 = vmatprep.subr.mxu0 0.0
    %687 = vmatpush1.msra.mxu0 0.0
    %688 = vmatprep.subr.mxu0 0.0
    %689 = vmatpush1.msra.mxu0 0.0
    %690 = vmatprep.subr.mxu0 0.0
    %691 = vmatpush1.msra.mxu0 0.0
    %692 = vmatprep.subr.mxu0 0.0
    %693 = vmatpush1.msra.mxu0 0.0
    %694 = vmatprep.subr.mxu0 0.0
    %695 = vmatpush1.msra.mxu0 0.0
    %696 = vmatprep.subr.mxu0 0.0
    %697 = vmatpush1.msra.mxu0 0.0
    %698 = vmatprep.subr.mxu0 0.0
    %699 = vmatpush1.msra.mxu0 0.0
    %700 = vmatprep.subr.mxu0 0.0
    %701 = vmatpush1.msra.mxu0 0.0
    %702 = vmatprep.subr.mxu0 0.0
    %703 = vmatpush1.msra.mxu0 0.0
    %704 = vmatprep.subr.mxu0 0.0
    %705 = vmatpush1.msra.mxu0 %v669
    %706 = vmatprep.subr.mxu0 0.0
    %707 = vmatpush2.msra.mxu0 0.0
    %708 = vmatprep.subr.mxu0 0.0
    %709 = vmatpush2.msra.mxu0 0.0
    %710 = vmatprep.subr.mxu0 0.0
    %711 = vmatpush2.msra.mxu0 0.0
    %712 = vmatprep.subr.mxu0 0.0
    %713 = vmatpush2.msra.mxu0 0.0
    %714 = vmatprep.subr.mxu0 0.0
    %715 = vmatpush2.msra.mxu0 0.0
    %716 = vmatprep.subr.mxu0 0.0
    %717 = vmatpush2.msra.mxu0 0.0
    %718 = vmatprep.subr.mxu0 0.0
    %719 = vmatpush2.msra.mxu0 0.0
    %720 = vmatprep.subr.mxu0 0.0
    %721 = vmatpush2.msra.mxu0 0.0
    %722 = vmatprep.subr.mxu0 0.0
    %723 = vmatpush2.msra.mxu0 0.0
    %724 = vmatprep.subr.mxu0 0.0
    %725 = vmatpush2.msra.mxu0 0.0
    %726 = vmatprep.subr.mxu0 0.0
    %727 = vmatpush2.msra.mxu0 0.0
    %728 = vmatprep.subr.mxu0 0.0
    %729 = vmatpush2.msra.mxu0 0.0
    %730 = vmatprep.subr.mxu0 0.0
    %731 = vmatpush2.msra.mxu0 0.0
    %732 = vmatprep.subr.mxu0 0.0
    %733 = vmatpush2.msra.mxu0 0.0
    %734 = vmatprep.subr.mxu0 0.0
    %735 = vmatpush2.msra.mxu0 0.0
    %736 = vmatprep.subr.mxu0 0.0
    %737 = vmatpush2.msra.mxu0 0.0
    %738 = vmatprep.mubr.f32.mxu0 0.0
    %739 = vmatmul.mubr.f32.gmra.mxu0 %v672
    %v740 = vpop.f32.mrf.mxu0
    %v741 = vadd.f32 0.0, %v740
    %v742 = vpop.f32.mrf.mxu0
    %743 = vdwg.mxu0
    %744 = vrot.lane.b32.xlu0 %v154, 56
    %v745 = vpop.permute.xlu0 %744
    %v748 = vsel %vm160, %v667, 0
    %750 = vmatprep.subr.mxu0 0.0
    %751 = vmatpush1.msra.mxu0 0.0
    %752 = vmatprep.subr.mxu0 0.0
    %753 = vmatpush1.msra.mxu0 0.0
    %754 = vmatprep.subr.mxu0 0.0
    %755 = vmatpush1.msra.mxu0 0.0
    %756 = vmatprep.subr.mxu0 0.0
    %757 = vmatpush1.msra.mxu0 0.0
    %758 = vmatprep.subr.mxu0 0.0
    %759 = vmatpush1.msra.mxu0 0.0
    %760 = vmatprep.subr.mxu0 0.0
    %761 = vmatpush1.msra.mxu0 0.0
    %762 = vmatprep.subr.mxu0 0.0
    %763 = vmatpush1.msra.mxu0 0.0
    %764 = vmatprep.subr.mxu0 0.0
    %765 = vmatpush1.msra.mxu0 0.0
    %766 = vmatprep.subr.mxu0 0.0
    %767 = vmatpush1.msra.mxu0 0.0
    %768 = vmatprep.subr.mxu0 0.0
    %769 = vmatpush1.msra.mxu0 0.0
    %770 = vmatprep.subr.mxu0 0.0
    %771 = vmatpush1.msra.mxu0 0.0
    %772 = vmatprep.subr.mxu0 0.0
    %773 = vmatpush1.msra.mxu0 0.0
    %774 = vmatprep.subr.mxu0 0.0
    %775 = vmatpush1.msra.mxu0 0.0
    %776 = vmatprep.subr.mxu0 0.0
    %777 = vmatpush1.msra.mxu0 0.0
    %778 = vmatprep.subr.mxu0 0.0
    %779 = vmatpush1.msra.mxu0 0.0
    %780 = vmatprep.subr.mxu0 0.0
    %781 = vmatpush1.msra.mxu0 %v745
    %782 = vmatprep.subr.mxu0 0.0
    %783 = vmatpush2.msra.mxu0 0.0
    %784 = vmatprep.subr.mxu0 0.0
    %785 = vmatpush2.msra.mxu0 0.0
    %786 = vmatprep.subr.mxu0 0.0
    %787 = vmatpush2.msra.mxu0 0.0
    %788 = vmatprep.subr.mxu0 0.0
    %789 = vmatpush2.msra.mxu0 0.0
    %790 = vmatprep.subr.mxu0 0.0
    %791 = vmatpush2.msra.mxu0 0.0
    %792 = vmatprep.subr.mxu0 0.0
    %793 = vmatpush2.msra.mxu0 0.0
    %794 = vmatprep.subr.mxu0 0.0
    %795 = vmatpush2.msra.mxu0 0.0
    %796 = vmatprep.subr.mxu0 0.0
    %797 = vmatpush2.msra.mxu0 0.0
    %798 = vmatprep.subr.mxu0 0.0
    %799 = vmatpush2.msra.mxu0 0.0
    %800 = vmatprep.subr.mxu0 0.0
    %801 = vmatpush2.msra.mxu0 0.0
    %802 = vmatprep.subr.mxu0 0.0
    %803 = vmatpush2.msra.mxu0 0.0
    %804 = vmatprep.subr.mxu0 0.0
    %805 = vmatpush2.msra.mxu0 0.0
    %806 = vmatprep.subr.mxu0 0.0
    %807 = vmatpush2.msra.mxu0 0.0
    %808 = vmatprep.subr.mxu0 0.0
    %809 = vmatpush2.msra.mxu0 0.0
    %810 = vmatprep.subr.mxu0 0.0
    %811 = vmatpush2.msra.mxu0 0.0
    %812 = vmatprep.subr.mxu0 0.0
    %813 = vmatpush2.msra.mxu0 0.0
    %814 = vmatprep.mubr.f32.mxu0 0.0
    %815 = vmatmul.mubr.f32.gmra.mxu0 %v748
    %v816 = vpop.f32.mrf.mxu0
    %v817 = vadd.f32 0.0, %v816
    %v818 = vpop.f32.mrf.mxu0
    %819 = vdwg.mxu0
    %820 = vrot.lane.b32.xlu0 %v149, 112
    %v821 = vpop.permute.xlu0 %820
    %822 = vrot.lane.b32.xlu0 %v149, 80
    %v823 = vpop.permute.xlu0 %822
    %v824 = vsel %vm160, %v821, 0
    %v826 = vsel %vm160, %v823, 0
    %828 = vmatprep.subr.mxu0 0.0
    %829 = vmatpush1.xpose.msra.mxu0 0.0
    %830 = vmatprep.subr.mxu0 0.0
    %831 = vmatpush1.xpose.msra.mxu0 0.0
    %832 = vmatprep.subr.mxu0 0.0
    %833 = vmatpush1.xpose.msra.mxu0 0.0
    %834 = vmatprep.subr.mxu0 0.0
    %835 = vmatpush1.xpose.msra.mxu0 0.0
    %836 = vmatprep.subr.mxu0 0.0
    %837 = vmatpush1.xpose.msra.mxu0 0.0
    %838 = vmatprep.subr.mxu0 0.0
    %839 = vmatpush1.xpose.msra.mxu0 0.0
    %840 = vmatprep.subr.mxu0 0.0
    %841 = vmatpush1.xpose.msra.mxu0 0.0
    %842 = vmatprep.subr.mxu0 0.0
    %843 = vmatpush1.xpose.msra.mxu0 0.0
    %844 = vmatprep.subr.mxu0 0.0
    %845 = vmatpush1.xpose.msra.mxu0 0.0
    %846 = vmatprep.subr.mxu0 0.0
    %847 = vmatpush1.xpose.msra.mxu0 0.0
    %848 = vmatprep.subr.mxu0 0.0
    %849 = vmatpush1.xpose.msra.mxu0 0.0
    %850 = vmatprep.subr.mxu0 0.0
    %851 = vmatpush1.xpose.msra.mxu0 0.0
    %852 = vmatprep.subr.mxu0 0.0
    %853 = vmatpush1.xpose.msra.mxu0 0.0
    %854 = vmatprep.subr.mxu0 0.0
    %855 = vmatpush1.xpose.msra.mxu0 0.0
    %856 = vmatprep.subr.mxu0 0.0
    %857 = vmatpush1.xpose.msra.mxu0 0.0
    %858 = vmatprep.subr.mxu0 0.0
    %859 = vmatpush1.xpose.msra.mxu0 %v826
    %860 = vmatprep.subr.mxu0 0.0
    %861 = vmatpush2.xpose.msra.mxu0 0.0
    %862 = vmatprep.subr.mxu0 0.0
    %863 = vmatpush2.xpose.msra.mxu0 0.0
    %864 = vmatprep.subr.mxu0 0.0
    %865 = vmatpush2.xpose.msra.mxu0 0.0
    %866 = vmatprep.subr.mxu0 0.0
    %867 = vmatpush2.xpose.msra.mxu0 0.0
    %868 = vmatprep.subr.mxu0 0.0
    %869 = vmatpush2.xpose.msra.mxu0 0.0
    %870 = vmatprep.subr.mxu0 0.0
    %871 = vmatpush2.xpose.msra.mxu0 0.0
    %872 = vmatprep.subr.mxu0 0.0
    %873 = vmatpush2.xpose.msra.mxu0 0.0
    %874 = vmatprep.subr.mxu0 0.0
    %875 = vmatpush2.xpose.msra.mxu0 0.0
    %876 = vmatprep.subr.mxu0 0.0
    %877 = vmatpush2.xpose.msra.mxu0 0.0
    %878 = vmatprep.subr.mxu0 0.0
    %879 = vmatpush2.xpose.msra.mxu0 0.0
    %880 = vmatprep.subr.mxu0 0.0
    %881 = vmatpush2.xpose.msra.mxu0 0.0
    %882 = vmatprep.subr.mxu0 0.0
    %883 = vmatpush2.xpose.msra.mxu0 0.0
    %884 = vmatprep.subr.mxu0 0.0
    %885 = vmatpush2.xpose.msra.mxu0 0.0
    %886 = vmatprep.subr.mxu0 0.0
    %887 = vmatpush2.xpose.msra.mxu0 0.0
    %888 = vmatprep.subr.mxu0 0.0
    %889 = vmatpush2.xpose.msra.mxu0 0.0
    %890 = vmatprep.subr.mxu0 0.0
    %891 = vmatpush2.xpose.msra.mxu0 0.0
    %892 = vmatprep.mubr.f32.mxu0 0.0
    %893 = vmatmul.mubr.f32.gmra.mxu0 %v824
    %v894 = vpop.f32.mrf.mxu0
    %v895 = vadd.f32 0.0, %v894
    %v896 = vpop.f32.mrf.mxu0
    %897 = vdwg.mxu0
    %898 = vrot.lane.b32.xlu0 %v154, 112
    %v899 = vpop.permute.xlu0 %898
    %900 = vrot.lane.b32.xlu0 %v154, 80
    %v901 = vpop.permute.xlu0 %900
    %v902 = vsel %vm160, %v899, 0
    %v904 = vsel %vm160, %v901, 0
    %906 = vmatprep.subr.mxu0 0.0
    %907 = vmatpush1.xpose.msra.mxu0 0.0
    %908 = vmatprep.subr.mxu0 0.0
    %909 = vmatpush1.xpose.msra.mxu0 0.0
    %910 = vmatprep.subr.mxu0 0.0
    %911 = vmatpush1.xpose.msra.mxu0 0.0
    %912 = vmatprep.subr.mxu0 0.0
    %913 = vmatpush1.xpose.msra.mxu0 0.0
    %914 = vmatprep.subr.mxu0 0.0
    %915 = vmatpush1.xpose.msra.mxu0 0.0
    %916 = vmatprep.subr.mxu0 0.0
    %917 = vmatpush1.xpose.msra.mxu0 0.0
    %918 = vmatprep.subr.mxu0 0.0
    %919 = vmatpush1.xpose.msra.mxu0 0.0
    %920 = vmatprep.subr.mxu0 0.0
    %921 = vmatpush1.xpose.msra.mxu0 0.0
    %922 = vmatprep.subr.mxu0 0.0
    %923 = vmatpush1.xpose.msra.mxu0 0.0
    %924 = vmatprep.subr.mxu0 0.0
    %925 = vmatpush1.xpose.msra.mxu0 0.0
    %926 = vmatprep.subr.mxu0 0.0
    %927 = vmatpush1.xpose.msra.mxu0 0.0
    %928 = vmatprep.subr.mxu0 0.0
    %929 = vmatpush1.xpose.msra.mxu0 0.0
    %930 = vmatprep.subr.mxu0 0.0
    %931 = vmatpush1.xpose.msra.mxu0 0.0
    %932 = vmatprep.subr.mxu0 0.0
    %933 = vmatpush1.xpose.msra.mxu0 0.0
    %934 = vmatprep.subr.mxu0 0.0
    %935 = vmatpush1.xpose.msra.mxu0 0.0
    %936 = vmatprep.subr.mxu0 0.0
    %937 = vmatpush1.xpose.msra.mxu0 %v904
    %938 = vmatprep.subr.mxu0 0.0
    %939 = vmatpush2.xpose.msra.mxu0 0.0
    %940 = vmatprep.subr.mxu0 0.0
    %941 = vmatpush2.xpose.msra.mxu0 0.0
    %942 = vmatprep.subr.mxu0 0.0
    %943 = vmatpush2.xpose.msra.mxu0 0.0
    %944 = vmatprep.subr.mxu0 0.0
    %945 = vmatpush2.xpose.msra.mxu0 0.0
    %946 = vmatprep.subr.mxu0 0.0
    %947 = vmatpush2.xpose.msra.mxu0 0.0
    %948 = vmatprep.subr.mxu0 0.0
    %949 = vmatpush2.xpose.msra.mxu0 0.0
    %950 = vmatprep.subr.mxu0 0.0
    %951 = vmatpush2.xpose.msra.mxu0 0.0
    %952 = vmatprep.subr.mxu0 0.0
    %953 = vmatpush2.xpose.msra.mxu0 0.0
    %954 = vmatprep.subr.mxu0 0.0
    %955 = vmatpush2.xpose.msra.mxu0 0.0
    %956 = vmatprep.subr.mxu0 0.0
    %957 = vmatpush2.xpose.msra.mxu0 0.0
    %958 = vmatprep.subr.mxu0 0.0
    %959 = vmatpush2.xpose.msra.mxu0 0.0
    %960 = vmatprep.subr.mxu0 0.0
    %961 = vmatpush2.xpose.msra.mxu0 0.0
    %962 = vmatprep.subr.mxu0 0.0
    %963 = vmatpush2.xpose.msra.mxu0 0.0
    %964 = vmatprep.subr.mxu0 0.0
    %965 = vmatpush2.xpose.msra.mxu0 0.0
    %966 = vmatprep.subr.mxu0 0.0
    %967 = vmatpush2.xpose.msra.mxu0 0.0
    %968 = vmatprep.subr.mxu0 0.0
    %969 = vmatpush2.xpose.msra.mxu0 0.0
    %970 = vmatprep.mubr.f32.mxu0 0.0
    %971 = vmatmul.mubr.f32.gmra.mxu0 %v902
    %v972 = vpop.f32.mrf.mxu0
    %v973 = vadd.f32 0.0, %v972
    %v974 = vpop.f32.mrf.mxu0
    %975 = vdwg.mxu0
    %v976 = vmul.f32 %v895, 0.35355338
    %v977 = vmul.f32 %v973, 0.35355338
    %v978 = vsel %vm160, %v976, -inf
    %979 = vmax.xlane.f32.xlu0 %v978
    %v980 = vpop.xlane.xlu0 %979
    %v981 = vsel %vm160, %v977, -inf
    %982 = vmax.xlane.f32.xlu0 %v981
    %v983 = vpop.xlane.xlu0 %982
    %v984 = vsub.f32 %v976, %v980
    %v985 = vsub.f32 %v977, %v983
    %v986 = vmul.f32 %v984, 1.442695
    %v987 = vpow.pop %v986
    %v988 = vmul.f32 %v985, 1.442695
    %v989 = vpow.pop %v988
    %v990 = vsel %vm160, %v987, 0.0
    %991 = vadd.xlane.f32.xlu0 %v990
    %v992 = vpop.xlane.xlu0 %991
    %v993 = vsel %vm160, %v989, 0.0
    %994 = vadd.xlane.f32.xlu0 %v993
    %v995 = vpop.xlane.xlu0 %994
    %v996 = vrcp.pop %v992
    %v997 = vmul.f32 %v987, %v996
    %v998 = vrcp.pop %v995
    %v999 = vmul.f32 %v989, %v998
    %1000 = vrot.lane.b32.xlu0 %v149, 48
    %v1001 = vpop.permute.xlu0 %1000
    %v1004 = vsel %vm160, %v997, 0
    %1006 = vmatprep.subr.mxu0 0.0
    %1007 = vmatpush1.msra.mxu0 0.0
    %1008 = vmatprep.subr.mxu0 0.0
    %1009 = vmatpush1.msra.mxu0 0.0
    %1010 = vmatprep.subr.mxu0 0.0
    %1011 = vmatpush1.msra.mxu0 0.0
    %1012 = vmatprep.subr.mxu0 0.0
    %1013 = vmatpush1.msra.mxu0 0.0
    %1014 = vmatprep.subr.mxu0 0.0
    %1015 = vmatpush1.msra.mxu0 0.0
    %1016 = vmatprep.subr.mxu0 0.0
    %1017 = vmatpush1.msra.mxu0 0.0
    %1018 = vmatprep.subr.mxu0 0.0
    %1019 = vmatpush1.msra.mxu0 0.0
    %1020 = vmatprep.subr.mxu0 0.0
    %1021 = vmatpush1.msra.mxu0 0.0
    %1022 = vmatprep.subr.mxu0 0.0
    %1023 = vmatpush1.msra.mxu0 0.0
    %1024 = vmatprep.subr.mxu0 0.0
    %1025 = vmatpush1.msra.mxu0 0.0
    %1026 = vmatprep.subr.mxu0 0.0
    %1027 = vmatpush1.msra.mxu0 0.0
    %1028 = vmatprep.subr.mxu0 0.0
    %1029 = vmatpush1.msra.mxu0 0.0
    %1030 = vmatprep.subr.mxu0 0.0
    %1031 = vmatpush1.msra.mxu0 0.0
    %1032 = vmatprep.subr.mxu0 0.0
    %1033 = vmatpush1.msra.mxu0 0.0
    %1034 = vmatprep.subr.mxu0 0.0
    %1035 = vmatpush1.msra.mxu0 0.0
    %1036 = vmatprep.subr.mxu0 0.0
    %1037 = vmatpush1.msra.mxu0 %v1001
    %1038 = vmatprep.subr.mxu0 0.0
    %1039 = vmatpush2.msra.mxu0 0.0
    %1040 = vmatprep.subr.mxu0 0.0
    %1041 = vmatpush2.msra.mxu0 0.0
    %1042 = vmatprep.subr.mxu0 0.0
    %1043 = vmatpush2.msra.mxu0 0.0
    %1044 = vmatprep.subr.mxu0 0.0
    %1045 = vmatpush2.msra.mxu0 0.0
    %1046 = vmatprep.subr.mxu0 0.0
    %1047 = vmatpush2.msra.mxu0 0.0
    %1048 = vmatprep.subr.mxu0 0.0
    %1049 = vmatpush2.msra.mxu0 0.0
    %1050 = vmatprep.subr.mxu0 0.0
    %1051 = vmatpush2.msra.mxu0 0.0
    %1052 = vmatprep.subr.mxu0 0.0
    %1053 = vmatpush2.msra.mxu0 0.0
    %1054 = vmatprep.subr.mxu0 0.0
    %1055 = vmatpush2.msra.mxu0 0.0
    %1056 = vmatprep.subr.mxu0 0.0
    %1057 = vmatpush2.msra.mxu0 0.0
    %1058 = vmatprep.subr.mxu0 0.0
    %1059 = vmatpush2.msra.mxu0 0.0
    %1060 = vmatprep.subr.mxu0 0.0
    %1061 = vmatpush2.msra.mxu0 0.0
    %1062 = vmatprep.subr.mxu0 0.0
    %1063 = vmatpush2.msra.mxu0 0.0
    %1064 = vmatprep.subr.mxu0 0.0
    %1065 = vmatpush2.msra.mxu0 0.0
    %1066 = vmatprep.subr.mxu0 0.0
    %1067 = vmatpush2.msra.mxu0 0.0
    %1068 = vmatprep.subr.mxu0 0.0
    %1069 = vmatpush2.msra.mxu0 0.0
    %1070 = vmatprep.mubr.f32.mxu0 0.0
    %1071 = vmatmul.mubr.f32.gmra.mxu0 %v1004
    %v1072 = vpop.f32.mrf.mxu0
    %v1073 = vadd.f32 0.0, %v1072
    %v1074 = vpop.f32.mrf.mxu0
    %1075 = vdwg.mxu0
    %1076 = vrot.lane.b32.xlu0 %v154, 48
    %v1077 = vpop.permute.xlu0 %1076
    %v1080 = vsel %vm160, %v999, 0
    %1082 = vmatprep.subr.mxu0 0.0
    %1083 = vmatpush1.msra.mxu0 0.0
    %1084 = vmatprep.subr.mxu0 0.0
    %1085 = vmatpush1.msra.mxu0 0.0
    %1086 = vmatprep.subr.mxu0 0.0
    %1087 = vmatpush1.msra.mxu0 0.0
    %1088 = vmatprep.subr.mxu0 0.0
    %1089 = vmatpush1.msra.mxu0 0.0
    %1090 = vmatprep.subr.mxu0 0.0
    %1091 = vmatpush1.msra.mxu0 0.0
    %1092 = vmatprep.subr.mxu0 0.0
    %1093 = vmatpush1.msra.mxu0 0.0
    %1094 = vmatprep.subr.mxu0 0.0
    %1095 = vmatpush1.msra.mxu0 0.0
    %1096 = vmatprep.subr.mxu0 0.0
    %1097 = vmatpush1.msra.mxu0 0.0
    %1098 = vmatprep.subr.mxu0 0.0
    %1099 = vmatpush1.msra.mxu0 0.0
    %1100 = vmatprep.subr.mxu0 0.0
    %1101 = vmatpush1.msra.mxu0 0.0
    %1102 = vmatprep.subr.mxu0 0.0
    %1103 = vmatpush1.msra.mxu0 0.0
    %1104 = vmatprep.subr.mxu0 0.0
    %1105 = vmatpush1.msra.mxu0 0.0
    %1106 = vmatprep.subr.mxu0 0.0
    %1107 = vmatpush1.msra.mxu0 0.0
    %1108 = vmatprep.subr.mxu0 0.0
    %1109 = vmatpush1.msra.mxu0 0.0
    %1110 = vmatprep.subr.mxu0 0.0
    %1111 = vmatpush1.msra.mxu0 0.0
    %1112 = vmatprep.subr.mxu0 0.0
    %1113 = vmatpush1.msra.mxu0 %v1077
    %1114 = vmatprep.subr.mxu0 0.0
    %1115 = vmatpush2.msra.mxu0 0.0
    %1116 = vmatprep.subr.mxu0 0.0
    %1117 = vmatpush2.msra.mxu0 0.0
    %1118 = vmatprep.subr.mxu0 0.0
    %1119 = vmatpush2.msra.mxu0 0.0
    %1120 = vmatprep.subr.mxu0 0.0
    %1121 = vmatpush2.msra.mxu0 0.0
    %1122 = vmatprep.subr.mxu0 0.0
    %1123 = vmatpush2.msra.mxu0 0.0
    %1124 = vmatprep.subr.mxu0 0.0
    %1125 = vmatpush2.msra.mxu0 0.0
    %1126 = vmatprep.subr.mxu0 0.0
    %1127 = vmatpush2.msra.mxu0 0.0
    %1128 = vmatprep.subr.mxu0 0.0
    %1129 = vmatpush2.msra.mxu0 0.0
    %1130 = vmatprep.subr.mxu0 0.0
    %1131 = vmatpush2.msra.mxu0 0.0
    %1132 = vmatprep.subr.mxu0 0.0
    %1133 = vmatpush2.msra.mxu0 0.0
    %1134 = vmatprep.subr.mxu0 0.0
    %1135 = vmatpush2.msra.mxu0 0.0
    %1136 = vmatprep.subr.mxu0 0.0
    %1137 = vmatpush2.msra.mxu0 0.0
    %1138 = vmatprep.subr.mxu0 0.0
    %1139 = vmatpush2.msra.mxu0 0.0
    %1140 = vmatprep.subr.mxu0 0.0
    %1141 = vmatpush2.msra.mxu0 0.0
    %1142 = vmatprep.subr.mxu0 0.0
    %1143 = vmatpush2.msra.mxu0 0.0
    %1144 = vmatprep.subr.mxu0 0.0
    %1145 = vmatpush2.msra.mxu0 0.0
    %1146 = vmatprep.mubr.f32.mxu0 0.0
    %1147 = vmatmul.mubr.f32.gmra.mxu0 %v1080
    %v1148 = vpop.f32.mrf.mxu0
    %v1149 = vadd.f32 0.0, %v1148
    %v1150 = vpop.f32.mrf.mxu0
    %1151 = vdwg.mxu0
    %1152 = vrot.lane.b32.xlu0 %v149, 104
    %v1153 = vpop.permute.xlu0 %1152
    %1154 = vrot.lane.b32.xlu0 %v149, 72
    %v1155 = vpop.permute.xlu0 %1154
    %v1156 = vsel %vm160, %v1153, 0
    %v1158 = vsel %vm160, %v1155, 0
    %1160 = vmatprep.subr.mxu0 0.0
    %1161 = vmatpush1.xpose.msra.mxu0 0.0
    %1162 = vmatprep.subr.mxu0 0.0
    %1163 = vmatpush1.xpose.msra.mxu0 0.0
    %1164 = vmatprep.subr.mxu0 0.0
    %1165 = vmatpush1.xpose.msra.mxu0 0.0
    %1166 = vmatprep.subr.mxu0 0.0
    %1167 = vmatpush1.xpose.msra.mxu0 0.0
    %1168 = vmatprep.subr.mxu0 0.0
    %1169 = vmatpush1.xpose.msra.mxu0 0.0
    %1170 = vmatprep.subr.mxu0 0.0
    %1171 = vmatpush1.xpose.msra.mxu0 0.0
    %1172 = vmatprep.subr.mxu0 0.0
    %1173 = vmatpush1.xpose.msra.mxu0 0.0
    %1174 = vmatprep.subr.mxu0 0.0
    %1175 = vmatpush1.xpose.msra.mxu0 0.0
    %1176 = vmatprep.subr.mxu0 0.0
    %1177 = vmatpush1.xpose.msra.mxu0 0.0
    %1178 = vmatprep.subr.mxu0 0.0
    %1179 = vmatpush1.xpose.msra.mxu0 0.0
    %1180 = vmatprep.subr.mxu0 0.0
    %1181 = vmatpush1.xpose.msra.mxu0 0.0
    %1182 = vmatprep.subr.mxu0 0.0
    %1183 = vmatpush1.xpose.msra.mxu0 0.0
    %1184 = vmatprep.subr.mxu0 0.0
    %1185 = vmatpush1.xpose.msra.mxu0 0.0
    %1186 = vmatprep.subr.mxu0 0.0
    %1187 = vmatpush1.xpose.msra.mxu0 0.0
    %1188 = vmatprep.subr.mxu0 0.0
    %1189 = vmatpush1.xpose.msra.mxu0 0.0
    %1190 = vmatprep.subr.mxu0 0.0
    %1191 = vmatpush1.xpose.msra.mxu0 %v1158
    %1192 = vmatprep.subr.mxu0 0.0
    %1193 = vmatpush2.xpose.msra.mxu0 0.0
    %1194 = vmatprep.subr.mxu0 0.0
    %1195 = vmatpush2.xpose.msra.mxu0 0.0
    %1196 = vmatprep.subr.mxu0 0.0
    %1197 = vmatpush2.xpose.msra.mxu0 0.0
    %1198 = vmatprep.subr.mxu0 0.0
    %1199 = vmatpush2.xpose.msra.mxu0 0.0
    %1200 = vmatprep.subr.mxu0 0.0
    %1201 = vmatpush2.xpose.msra.mxu0 0.0
    %1202 = vmatprep.subr.mxu0 0.0
    %1203 = vmatpush2.xpose.msra.mxu0 0.0
    %1204 = vmatprep.subr.mxu0 0.0
    %1205 = vmatpush2.xpose.msra.mxu0 0.0
    %1206 = vmatprep.subr.mxu0 0.0
    %1207 = vmatpush2.xpose.msra.mxu0 0.0
    %1208 = vmatprep.subr.mxu0 0.0
    %1209 = vmatpush2.xpose.msra.mxu0 0.0
    %1210 = vmatprep.subr.mxu0 0.0
    %1211 = vmatpush2.xpose.msra.mxu0 0.0
    %1212 = vmatprep.subr.mxu0 0.0
    %1213 = vmatpush2.xpose.msra.mxu0 0.0
    %1214 = vmatprep.subr.mxu0 0.0
    %1215 = vmatpush2.xpose.msra.mxu0 0.0
    %1216 = vmatprep.subr.mxu0 0.0
    %1217 = vmatpush2.xpose.msra.mxu0 0.0
    %1218 = vmatprep.subr.mxu0 0.0
    %1219 = vmatpush2.xpose.msra.mxu0 0.0
    %1220 = vmatprep.subr.mxu0 0.0
    %1221 = vmatpush2.xpose.msra.mxu0 0.0
    %1222 = vmatprep.subr.mxu0 0.0
    %1223 = vmatpush2.xpose.msra.mxu0 0.0
    %1224 = vmatprep.mubr.f32.mxu0 0.0
    %1225 = vmatmul.mubr.f32.gmra.mxu0 %v1156
    %v1226 = vpop.f32.mrf.mxu0
    %v1227 = vadd.f32 0.0, %v1226
    %v1228 = vpop.f32.mrf.mxu0
    %1229 = vdwg.mxu0
    %1230 = vrot.lane.b32.xlu0 %v154, 104
    %v1231 = vpop.permute.xlu0 %1230
    %1232 = vrot.lane.b32.xlu0 %v154, 72
    %v1233 = vpop.permute.xlu0 %1232
    %v1234 = vsel %vm160, %v1231, 0
    %v1236 = vsel %vm160, %v1233, 0
    %1238 = vmatprep.subr.mxu0 0.0
    %1239 = vmatpush1.xpose.msra.mxu0 0.0
    %1240 = vmatprep.subr.mxu0 0.0
    %1241 = vmatpush1.xpose.msra.mxu0 0.0
    %1242 = vmatprep.subr.mxu0 0.0
    %1243 = vmatpush1.xpose.msra.mxu0 0.0
    %1244 = vmatprep.subr.mxu0 0.0
    %1245 = vmatpush1.xpose.msra.mxu0 0.0
    %1246 = vmatprep.subr.mxu0 0.0
    %1247 = vmatpush1.xpose.msra.mxu0 0.0
    %1248 = vmatprep.subr.mxu0 0.0
    %1249 = vmatpush1.xpose.msra.mxu0 0.0
    %1250 = vmatprep.subr.mxu0 0.0
    %1251 = vmatpush1.xpose.msra.mxu0 0.0
    %1252 = vmatprep.subr.mxu0 0.0
    %1253 = vmatpush1.xpose.msra.mxu0 0.0
    %1254 = vmatprep.subr.mxu0 0.0
    %1255 = vmatpush1.xpose.msra.mxu0 0.0
    %1256 = vmatprep.subr.mxu0 0.0
    %1257 = vmatpush1.xpose.msra.mxu0 0.0
    %1258 = vmatprep.subr.mxu0 0.0
    %1259 = vmatpush1.xpose.msra.mxu0 0.0
    %1260 = vmatprep.subr.mxu0 0.0
    %1261 = vmatpush1.xpose.msra.mxu0 0.0
    %1262 = vmatprep.subr.mxu0 0.0
    %1263 = vmatpush1.xpose.msra.mxu0 0.0
    %1264 = vmatprep.subr.mxu0 0.0
    %1265 = vmatpush1.xpose.msra.mxu0 0.0
    %1266 = vmatprep.subr.mxu0 0.0
    %1267 = vmatpush1.xpose.msra.mxu0 0.0
    %1268 = vmatprep.subr.mxu0 0.0
    %1269 = vmatpush1.xpose.msra.mxu0 %v1236
    %1270 = vmatprep.subr.mxu0 0.0
    %1271 = vmatpush2.xpose.msra.mxu0 0.0
    %1272 = vmatprep.subr.mxu0 0.0
    %1273 = vmatpush2.xpose.msra.mxu0 0.0
    %1274 = vmatprep.subr.mxu0 0.0
    %1275 = vmatpush2.xpose.msra.mxu0 0.0
    %1276 = vmatprep.subr.mxu0 0.0
    %1277 = vmatpush2.xpose.msra.mxu0 0.0
    %1278 = vmatprep.subr.mxu0 0.0
    %1279 = vmatpush2.xpose.msra.mxu0 0.0
    %1280 = vmatprep.subr.mxu0 0.0
    %1281 = vmatpush2.xpose.msra.mxu0 0.0
    %1282 = vmatprep.subr.mxu0 0.0
    %1283 = vmatpush2.xpose.msra.mxu0 0.0
    %1284 = vmatprep.subr.mxu0 0.0
    %1285 = vmatpush2.xpose.msra.mxu0 0.0
    %1286 = vmatprep.subr.mxu0 0.0
    %1287 = vmatpush2.xpose.msra.mxu0 0.0
    %1288 = vmatprep.subr.mxu0 0.0
    %1289 = vmatpush2.xpose.msra.mxu0 0.0
    %1290 = vmatprep.subr.mxu0 0.0
    %1291 = vmatpush2.xpose.msra.mxu0 0.0
    %1292 = vmatprep.subr.mxu0 0.0
    %1293 = vmatpush2.xpose.msra.mxu0 0.0
    %1294 = vmatprep.subr.mxu0 0.0
    %1295 = vmatpush2.xpose.msra.mxu0 0.0
    %1296 = vmatprep.subr.mxu0 0.0
    %1297 = vmatpush2.xpose.msra.mxu0 0.0
    %1298 = vmatprep.subr.mxu0 0.0
    %1299 = vmatpush2.xpose.msra.mxu0 0.0
    %1300 = vmatprep.subr.mxu0 0.0
    %1301 = vmatpush2.xpose.msra.mxu0 0.0
    %1302 = vmatprep.mubr.f32.mxu0 0.0
    %1303 = vmatmul.mubr.f32.gmra.mxu0 %v1234
    %v1304 = vpop.f32.mrf.mxu0
    %v1305 = vadd.f32 0.0, %v1304
    %v1306 = vpop.f32.mrf.mxu0
    %1307 = vdwg.mxu0
    %v1308 = vmul.f32 %v1227, 0.35355338
    %v1309 = vmul.f32 %v1305, 0.35355338
    %v1310 = vsel %vm160, %v1308, -inf
    %1311 = vmax.xlane.f32.xlu0 %v1310
    %v1312 = vpop.xlane.xlu0 %1311
    %v1313 = vsel %vm160, %v1309, -inf
    %1314 = vmax.xlane.f32.xlu0 %v1313
    %v1315 = vpop.xlane.xlu0 %1314
    %v1316 = vsub.f32 %v1308, %v1312
    %v1317 = vsub.f32 %v1309, %v1315
    %v1318 = vmul.f32 %v1316, 1.442695
    %v1319 = vpow.pop %v1318
    %v1320 = vmul.f32 %v1317, 1.442695
    %v1321 = vpow.pop %v1320
    %v1322 = vsel %vm160, %v1319, 0.0
    %1323 = vadd.xlane.f32.xlu0 %v1322
    %v1324 = vpop.xlane.xlu0 %1323
    %v1325 = vsel %vm160, %v1321, 0.0
    %1326 = vadd.xlane.f32.xlu0 %v1325
    %v1327 = vpop.xlane.xlu0 %1326
    %v1328 = vrcp.pop %v1324
    %v1329 = vmul.f32 %v1319, %v1328
    %v1330 = vrcp.pop %v1327
    %v1331 = vmul.f32 %v1321, %v1330
    %1332 = vrot.lane.b32.xlu0 %v149, 40
    %v1333 = vpop.permute.xlu0 %1332
    %v1336 = vsel %vm160, %v1329, 0
    %1338 = vmatprep.subr.mxu0 0.0
    %1339 = vmatpush1.msra.mxu0 0.0
    %1340 = vmatprep.subr.mxu0 0.0
    %1341 = vmatpush1.msra.mxu0 0.0
    %1342 = vmatprep.subr.mxu0 0.0
    %1343 = vmatpush1.msra.mxu0 0.0
    %1344 = vmatprep.subr.mxu0 0.0
    %1345 = vmatpush1.msra.mxu0 0.0
    %1346 = vmatprep.subr.mxu0 0.0
    %1347 = vmatpush1.msra.mxu0 0.0
    %1348 = vmatprep.subr.mxu0 0.0
    %1349 = vmatpush1.msra.mxu0 0.0
    %1350 = vmatprep.subr.mxu0 0.0
    %1351 = vmatpush1.msra.mxu0 0.0
    %1352 = vmatprep.subr.mxu0 0.0
    %1353 = vmatpush1.msra.mxu0 0.0
    %1354 = vmatprep.subr.mxu0 0.0
    %1355 = vmatpush1.msra.mxu0 0.0
    %1356 = vmatprep.subr.mxu0 0.0
    %1357 = vmatpush1.msra.mxu0 0.0
    %1358 = vmatprep.subr.mxu0 0.0
    %1359 = vmatpush1.msra.mxu0 0.0
    %1360 = vmatprep.subr.mxu0 0.0
    %1361 = vmatpush1.msra.mxu0 0.0
    %1362 = vmatprep.subr.mxu0 0.0
    %1363 = vmatpush1.msra.mxu0 0.0
    %1364 = vmatprep.subr.mxu0 0.0
    %1365 = vmatpush1.msra.mxu0 0.0
    %1366 = vmatprep.subr.mxu0 0.0
    %1367 = vmatpush1.msra.mxu0 0.0
    %1368 = vmatprep.subr.mxu0 0.0
    %1369 = vmatpush1.msra.mxu0 %v1333
    %1370 = vmatprep.subr.mxu0 0.0
    %1371 = vmatpush2.msra.mxu0 0.0
    %1372 = vmatprep.subr.mxu0 0.0
    %1373 = vmatpush2.msra.mxu0 0.0
    %1374 = vmatprep.subr.mxu0 0.0
    %1375 = vmatpush2.msra.mxu0 0.0
    %1376 = vmatprep.subr.mxu0 0.0
    %1377 = vmatpush2.msra.mxu0 0.0
    %1378 = vmatprep.subr.mxu0 0.0
    %1379 = vmatpush2.msra.mxu0 0.0
    %1380 = vmatprep.subr.mxu0 0.0
    %1381 = vmatpush2.msra.mxu0 0.0
    %1382 = vmatprep.subr.mxu0 0.0
    %1383 = vmatpush2.msra.mxu0 0.0
    %1384 = vmatprep.subr.mxu0 0.0
    %1385 = vmatpush2.msra.mxu0 0.0
    %1386 = vmatprep.subr.mxu0 0.0
    %1387 = vmatpush2.msra.mxu0 0.0
    %1388 = vmatprep.subr.mxu0 0.0
    %1389 = vmatpush2.msra.mxu0 0.0
    %1390 = vmatprep.subr.mxu0 0.0
    %1391 = vmatpush2.msra.mxu0 0.0
    %1392 = vmatprep.subr.mxu0 0.0
    %1393 = vmatpush2.msra.mxu0 0.0
    %1394 = vmatprep.subr.mxu0 0.0
    %1395 = vmatpush2.msra.mxu0 0.0
    %1396 = vmatprep.subr.mxu0 0.0
    %1397 = vmatpush2.msra.mxu0 0.0
    %1398 = vmatprep.subr.mxu0 0.0
    %1399 = vmatpush2.msra.mxu0 0.0
    %1400 = vmatprep.subr.mxu0 0.0
    %1401 = vmatpush2.msra.mxu0 0.0
    %1402 = vmatprep.mubr.f32.mxu0 0.0
    %1403 = vmatmul.mubr.f32.gmra.mxu0 %v1336
    %v1404 = vpop.f32.mrf.mxu0
    %v1405 = vadd.f32 0.0, %v1404
    %v1406 = vpop.f32.mrf.mxu0
    %1407 = vdwg.mxu0
    %1408 = vrot.lane.b32.xlu0 %v154, 40
    %v1409 = vpop.permute.xlu0 %1408
    %v1412 = vsel %vm160, %v1331, 0
    %1414 = vmatprep.subr.mxu0 0.0
    %1415 = vmatpush1.msra.mxu0 0.0
    %1416 = vmatprep.subr.mxu0 0.0
    %1417 = vmatpush1.msra.mxu0 0.0
    %1418 = vmatprep.subr.mxu0 0.0
    %1419 = vmatpush1.msra.mxu0 0.0
    %1420 = vmatprep.subr.mxu0 0.0
    %1421 = vmatpush1.msra.mxu0 0.0
    %1422 = vmatprep.subr.mxu0 0.0
    %1423 = vmatpush1.msra.mxu0 0.0
    %1424 = vmatprep.subr.mxu0 0.0
    %1425 = vmatpush1.msra.mxu0 0.0
    %1426 = vmatprep.subr.mxu0 0.0
    %1427 = vmatpush1.msra.mxu0 0.0
    %1428 = vmatprep.subr.mxu0 0.0
    %1429 = vmatpush1.msra.mxu0 0.0
    %1430 = vmatprep.subr.mxu0 0.0
    %1431 = vmatpush1.msra.mxu0 0.0
    %1432 = vmatprep.subr.mxu0 0.0
    %1433 = vmatpush1.msra.mxu0 0.0
    %1434 = vmatprep.subr.mxu0 0.0
    %1435 = vmatpush1.msra.mxu0 0.0
    %1436 = vmatprep.subr.mxu0 0.0
    %1437 = vmatpush1.msra.mxu0 0.0
    %1438 = vmatprep.subr.mxu0 0.0
    %1439 = vmatpush1.msra.mxu0 0.0
    %1440 = vmatprep.subr.mxu0 0.0
    %1441 = vmatpush1.msra.mxu0 0.0
    %1442 = vmatprep.subr.mxu0 0.0
    %1443 = vmatpush1.msra.mxu0 0.0
    %1444 = vmatprep.subr.mxu0 0.0
    %1445 = vmatpush1.msra.mxu0 %v1409
    %1446 = vmatprep.subr.mxu0 0.0
    %1447 = vmatpush2.msra.mxu0 0.0
    %1448 = vmatprep.subr.mxu0 0.0
    %1449 = vmatpush2.msra.mxu0 0.0
    %1450 = vmatprep.subr.mxu0 0.0
    %1451 = vmatpush2.msra.mxu0 0.0
    %1452 = vmatprep.subr.mxu0 0.0
    %1453 = vmatpush2.msra.mxu0 0.0
    %1454 = vmatprep.subr.mxu0 0.0
    %1455 = vmatpush2.msra.mxu0 0.0
    %1456 = vmatprep.subr.mxu0 0.0
    %1457 = vmatpush2.msra.mxu0 0.0
    %1458 = vmatprep.subr.mxu0 0.0
    %1459 = vmatpush2.msra.mxu0 0.0
    %1460 = vmatprep.subr.mxu0 0.0
    %1461 = vmatpush2.msra.mxu0 0.0
    %1462 = vmatprep.subr.mxu0 0.0
    %1463 = vmatpush2.msra.mxu0 0.0
    %1464 = vmatprep.subr.mxu0 0.0
    %1465 = vmatpush2.msra.mxu0 0.0
    %1466 = vmatprep.subr.mxu0 0.0
    %1467 = vmatpush2.msra.mxu0 0.0
    %1468 = vmatprep.subr.mxu0 0.0
    %1469 = vmatpush2.msra.mxu0 0.0
    %1470 = vmatprep.subr.mxu0 0.0
    %1471 = vmatpush2.msra.mxu0 0.0
    %1472 = vmatprep.subr.mxu0 0.0
    %1473 = vmatpush2.msra.mxu0 0.0
    %1474 = vmatprep.subr.mxu0 0.0
    %1475 = vmatpush2.msra.mxu0 0.0
    %1476 = vmatprep.subr.mxu0 0.0
    %1477 = vmatpush2.msra.mxu0 0.0
    %1478 = vmatprep.mubr.f32.mxu0 0.0
    %1479 = vmatmul.mubr.f32.gmra.mxu0 %v1412
    %v1480 = vpop.f32.mrf.mxu0
    %v1481 = vadd.f32 0.0, %v1480
    %v1482 = vpop.f32.mrf.mxu0
    %1483 = vdwg.mxu0
    %1486 = vrot.lane.b32.xlu0 %v741, 8
    %v1487 = vpop.permute.xlu0 %1486
    %1488 = vrot.lane.b32.xlu0 %v817, 8
    %v1489 = vpop.permute.xlu0 %1488
    %1494 = vrot.lane.b32.xlu0 %v1073, 16
    %v1495 = vpop.permute.xlu0 %1494
    %1496 = vrot.lane.b32.xlu0 %v1149, 16
    %v1497 = vpop.permute.xlu0 %1496
    %1502 = vrot.lane.b32.xlu0 %v1405, 24
    %v1503 = vpop.permute.xlu0 %1502
    %1504 = vrot.lane.b32.xlu0 %v1481, 24
    %v1505 = vpop.permute.xlu0 %1504
    %v1508 = vsel %vm160, %v409, %v1487
    %v1509 = vsel %vm160, %v485, %v1489
    %vm1510 = vcmask 130048
    %v1511 = vsel %vm1510, %v1508, %v1495
    %v1512 = vsel %vm1510, %v1509, %v1497
    %vm1513 = vcmask 195584
    %v1514 = vsel %vm1513, %v1511, %v1503
    %v1515 = vsel %vm1513, %v1512, %v1505
    %v1516 = vsel %vm75, %v1514, 0.0
    %1517 = vadd.xlane.f32.xlu0 %v1516
    %v1518 = vpop.xlane.xlu0 %1517
    %v1519 = vsel %vm75, %v1515, 0.0
    %1520 = vadd.xlane.f32.xlu0 %v1519
    %v1521 = vpop.xlane.xlu0 %1520
    %v1522 = vrcp.pop 32.0
    %v1523 = vmul.f32 %v1518, %v1522
    %v1524 = vmul.f32 %v1521, %v1522
    %v1525 = vsub.f32 %v1514, %v1523
    %v1526 = vsub.f32 %v1515, %v1524
    %v1527 = vmul.f32 %v1525, %v1525
    %v1528 = vmul.f32 %v1526, %v1526
    %v1529 = vsel %vm75, %v1527, 0.0
    %1530 = vadd.xlane.f32.xlu0 %v1529
    %v1531 = vpop.xlane.xlu0 %1530
    %v1532 = vsel %vm75, %v1528, 0.0
    %1533 = vadd.xlane.f32.xlu0 %v1532
    %v1534 = vpop.xlane.xlu0 %1533
    %v1535 = vmul.f32 %v1531, %v1522
    %v1536 = vmul.f32 %v1534, %v1522
    %v1537 = vadd.f32 %v1535, 1e-05
    %v1538 = vadd.f32 %v1536, 1e-05
    %v1539 = vrsqrt.pop %v1537
    %v1540 = vrsqrt.pop %v1538
    %v1541 = vmul.f32 %v1525, %v1539
    %v1542 = vmul.f32 %v1526, %v1540
    %v1543 = vlaneseq
    %v1544 = vshrl.u32 %v1543, 7
    %v1545 = vsub.s32 2, %v1544
    %v1546 = vrot.slane %v70, %v1545
    %v1547 = vmul.f32 %v1541, %v1546
    %v1548 = vmul.f32 %v1542, %v1546
    %1550 = vrot.lane.b32.xlu0 %v1546, 96
    %v1551 = vpop.permute.xlu0 %1550
    %v1553 = vadd.f32 %v1547, %v1551
    %v1554 = vadd.f32 %v1548, %v1551
    %v1555 = vadd.f32 %v56, %v1553
    %v1556 = vadd.f32 %v57, %v1554
    %v1557 = vlaneseq
    %v1558 = vshrl.u32 %v1557, 7
    %v1559 = vsub.s32 1, %v1558
    %v1560 = vrot.slane %v70, %v1559
    %1569 = vrot.lane.b32.xlu0 %v58, 32
    %v1570 = vpop.permute.xlu0 %1569
    %1571 = vrot.lane.b32.xlu0 %v59, 32
    %v1572 = vpop.permute.xlu0 %1571
    %1573 = vrot.lane.b32.xlu0 %v60, 32
    %v1574 = vpop.permute.xlu0 %1573
    %1575 = vrot.lane.b32.xlu0 %v61, 32
    %v1576 = vpop.permute.xlu0 %1575
    %1577 = vrot.lane.b32.xlu0 %v62, 32
    %v1578 = vpop.permute.xlu0 %1577
    %1579 = vrot.lane.b32.xlu0 %v63, 32
    %v1580 = vpop.permute.xlu0 %1579
    %1581 = vrot.lane.b32.xlu0 %v64, 32
    %v1582 = vpop.permute.xlu0 %1581
    %1583 = vrot.lane.b32.xlu0 %v65, 32
    %v1584 = vpop.permute.xlu0 %1583
    %v1585 = vsel %vm75, %v1570, %v1572
    %v1586 = vsel %vm75, %v1574, %v1576
    %v1587 = vsel %vm75, %v1578, %v1580
    %v1588 = vsel %vm75, %v1582, %v1584
    %v1594 = vsel %vm75, %v1555, 0
    %v1597 = vsel %vm75, %v1556, 0
    %1599 = vmatprep.subr.mxu0 0.0
    %1600 = vmatpush1.msra.mxu0 0.0
    %1601 = vmatprep.subr.mxu0 0.0
    %1602 = vmatpush1.msra.mxu0 0.0
    %1603 = vmatprep.subr.mxu0 0.0
    %1604 = vmatpush1.msra.mxu0 0.0
    %1605 = vmatprep.subr.mxu0 0.0
    %1606 = vmatpush1.msra.mxu0 0.0
    %1607 = vmatprep.subr.mxu0 0.0
    %1608 = vmatpush1.msra.mxu0 0.0
    %1609 = vmatprep.subr.mxu0 0.0
    %1610 = vmatpush1.msra.mxu0 0.0
    %1611 = vmatprep.subr.mxu0 0.0
    %1612 = vmatpush1.msra.mxu0 0.0
    %1613 = vmatprep.subr.mxu0 0.0
    %1614 = vmatpush1.msra.mxu0 0.0
    %1615 = vmatprep.subr.mxu0 0.0
    %1616 = vmatpush1.msra.mxu0 0.0
    %1617 = vmatprep.subr.mxu0 0.0
    %1618 = vmatpush1.msra.mxu0 0.0
    %1619 = vmatprep.subr.mxu0 0.0
    %1620 = vmatpush1.msra.mxu0 0.0
    %1621 = vmatprep.subr.mxu0 0.0
    %1622 = vmatpush1.msra.mxu0 0.0
    %1623 = vmatprep.subr.mxu0 0.0
    %1624 = vmatpush1.msra.mxu0 %v1588
    %1625 = vmatprep.subr.mxu0 0.0
    %1626 = vmatpush1.msra.mxu0 %v1587
    %1627 = vmatprep.subr.mxu0 0.0
    %1628 = vmatpush1.msra.mxu0 %v1586
    %1629 = vmatprep.subr.mxu0 0.0
    %1630 = vmatpush1.msra.mxu0 %v1585
    %1631 = vmatprep.subr.mxu0 0.0
    %1632 = vmatpush2.msra.mxu0 0.0
    %1633 = vmatprep.subr.mxu0 0.0
    %1634 = vmatpush2.msra.mxu0 0.0
    %1635 = vmatprep.subr.mxu0 0.0
    %1636 = vmatpush2.msra.mxu0 0.0
    %1637 = vmatprep.subr.mxu0 0.0
    %1638 = vmatpush2.msra.mxu0 0.0
    %1639 = vmatprep.subr.mxu0 0.0
    %1640 = vmatpush2.msra.mxu0 0.0
    %1641 = vmatprep.subr.mxu0 0.0
    %1642 = vmatpush2.msra.mxu0 0.0
    %1643 = vmatprep.subr.mxu0 0.0
    %1644 = vmatpush2.msra.mxu0 0.0
    %1645 = vmatprep.subr.mxu0 0.0
    %1646 = vmatpush2.msra.mxu0 0.0
    %1647 = vmatprep.subr.mxu0 0.0
    %1648 = vmatpush2.msra.mxu0 0.0
    %1649 = vmatprep.subr.mxu0 0.0
    %1650 = vmatpush2.msra.mxu0 0.0
    %1651 = vmatprep.subr.mxu0 0.0
    %1652 = vmatpush2.msra.mxu0 0.0
    %1653 = vmatprep.subr.mxu0 0.0
    %1654 = vmatpush2.msra.mxu0 0.0
    %1655 = vmatprep.subr.mxu0 0.0
    %1656 = vmatpush2.msra.mxu0 0.0
    %1657 = vmatprep.subr.mxu0 0.0
    %1658 = vmatpush2.msra.mxu0 0.0
    %1659 = vmatprep.subr.mxu0 0.0
    %1660 = vmatpush2.msra.mxu0 0.0
    %1661 = vmatprep.subr.mxu0 0.0
    %1662 = vmatpush2.msra.mxu0 0.0
    %1663 = vmatprep.mubr.f32.mxu0 0.0
    %1664 = vmatmul.mubr.f32.gmra.mxu0 %v1594
    %v1665 = vpop.f32.mrf.mxu0
    %v1666 = vadd.f32 %v1560, %v1665
    %v1667 = vpop.f32.mrf.mxu0
    %1668 = vmatprep.mubr.f32.mxu0 0.0
    %1669 = vmatmul.mubr.f32.gmra.mxu0 %v1597
    %v1670 = vpop.f32.mrf.mxu0
    %v1671 = vadd.f32 %v1560, %v1670
    %v1672 = vpop.f32.mrf.mxu0
    %1673 = vdwg.mxu0
    %v1674 = vmul.f32 %v1666, 0.5
    %v1675 = vmul.f32 %v1671, 0.5
    %v1676 = vmul.f32 %v1666, 0.70710677
    %v1677 = vmul.f32 %v1671, 0.70710677
    %v1678 = verf.f32.pop %v1676
    %v1679 = verf.f32.pop %v1677
    %v1680 = vadd.f32 %v1678, 1.0
    %v1681 = vadd.f32 %v1679, 1.0
    %v1682 = vmul.f32 %v1674, %v1680
    %v1683 = vmul.f32 %v1675, %v1681
    %1685 = vrot.lane.b32.xlu0 %v74, 32
    %v1686 = vpop.permute.xlu0 %1685
    %1688 = vmatprep.subr.mxu0 0.0
    %1689 = vmatpush1.xpose.msra.mxu0 0.0
    %1690 = vmatprep.subr.mxu0 0.0
    %1691 = vmatpush1.xpose.msra.mxu0 0.0
    %1692 = vmatprep.subr.mxu0 0.0
    %1693 = vmatpush1.xpose.msra.mxu0 0.0
    %1694 = vmatprep.subr.mxu0 0.0
    %1695 = vmatpush1.xpose.msra.mxu0 0.0
    %1696 = vmatprep.subr.mxu0 0.0
    %1697 = vmatpush1.xpose.msra.mxu0 0.0
    %1698 = vmatprep.subr.mxu0 0.0
    %1699 = vmatpush1.xpose.msra.mxu0 0.0
    %1700 = vmatprep.subr.mxu0 0.0
    %1701 = vmatpush1.xpose.msra.mxu0 0.0
    %1702 = vmatprep.subr.mxu0 0.0
    %1703 = vmatpush1.xpose.msra.mxu0 0.0
    %1704 = vmatprep.subr.mxu0 0.0
    %1705 = vmatpush1.xpose.msra.mxu0 0.0
    %1706 = vmatprep.subr.mxu0 0.0
    %1707 = vmatpush1.xpose.msra.mxu0 0.0
    %1708 = vmatprep.subr.mxu0 0.0
    %1709 = vmatpush1.xpose.msra.mxu0 0.0
    %1710 = vmatprep.subr.mxu0 0.0
    %1711 = vmatpush1.xpose.msra.mxu0 0.0
    %1712 = vmatprep.subr.mxu0 0.0
    %1713 = vmatpush1.xpose.msra.mxu0 %v69
    %1714 = vmatprep.subr.mxu0 0.0
    %1715 = vmatpush1.xpose.msra.mxu0 %v68
    %1716 = vmatprep.subr.mxu0 0.0
    %1717 = vmatpush1.xpose.msra.mxu0 %v67
    %1718 = vmatprep.subr.mxu0 0.0
    %1719 = vmatpush1.xpose.msra.mxu0 %v66
    %1720 = vmatprep.subr.mxu0 0.0
    %1721 = vmatpush2.xpose.msra.mxu0 0.0
    %1722 = vmatprep.subr.mxu0 0.0
    %1723 = vmatpush2.xpose.msra.mxu0 0.0
    %1724 = vmatprep.subr.mxu0 0.0
    %1725 = vmatpush2.xpose.msra.mxu0 0.0
    %1726 = vmatprep.subr.mxu0 0.0
    %1727 = vmatpush2.xpose.msra.mxu0 0.0
    %1728 = vmatprep.subr.mxu0 0.0
    %1729 = vmatpush2.xpose.msra.mxu0 0.0
    %1730 = vmatprep.subr.mxu0 0.0
    %1731 = vmatpush2.xpose.msra.mxu0 0.0
    %1732 = vmatprep.subr.mxu0 0.0
    %1733 = vmatpush2.xpose.msra.mxu0 0.0
    %1734 = vmatprep.subr.mxu0 0.0
    %1735 = vmatpush2.xpose.msra.mxu0 0.0
    %1736 = vmatprep.subr.mxu0 0.0
    %1737 = vmatpush2.xpose.msra.mxu0 0.0
    %1738 = vmatprep.subr.mxu0 0.0
    %1739 = vmatpush2.xpose.msra.mxu0 0.0
    %1740 = vmatprep.subr.mxu0 0.0
    %1741 = vmatpush2.xpose.msra.mxu0 0.0
    %1742 = vmatprep.subr.mxu0 0.0
    %1743 = vmatpush2.xpose.msra.mxu0 0.0
    %1744 = vmatprep.subr.mxu0 0.0
    %1745 = vmatpush2.xpose.msra.mxu0 0.0
    %1746 = vmatprep.subr.mxu0 0.0
    %1747 = vmatpush2.xpose.msra.mxu0 0.0
    %1748 = vmatprep.subr.mxu0 0.0
    %1749 = vmatpush2.xpose.msra.mxu0 0.0
    %1750 = vmatprep.subr.mxu0 0.0
    %1751 = vmatpush2.xpose.msra.mxu0 0.0
    %1752 = vmatprep.mubr.f32.mxu0 0.0
    %1753 = vmatmul.mubr.f32.gmra.mxu0 %v1682
    %v1754 = vpop.f32.mrf.mxu0
    %v1755 = vadd.f32 %v1686, %v1754
    %v1756 = vpop.f32.mrf.mxu0
    %1757 = vmatprep.mubr.f32.mxu0 0.0
    %1758 = vmatmul.mubr.f32.gmra.mxu0 %v1683
    %v1759 = vpop.f32.mrf.mxu0
    %v1760 = vadd.f32 %v1686, %v1759
    %v1761 = vpop.f32.mrf.mxu0
    %1762 = vdwg.mxu0
    %v1763 = vsel %vm75, %v1755, 0.0
    %1764 = vadd.xlane.f32.xlu0 %v1763
    %v1765 = vpop.xlane.xlu0 %1764
    %v1766 = vsel %vm75, %v1760, 0.0
    %1767 = vadd.xlane.f32.xlu0 %v1766
    %v1768 = vpop.xlane.xlu0 %1767
    %v1769 = vmul.f32 %v1765, %v1522
    %v1770 = vmul.f32 %v1768, %v1522
    %v1771 = vsub.f32 %v1755, %v1769
    %v1772 = vsub.f32 %v1760, %v1770
    %v1773 = vmul.f32 %v1771, %v1771
    %v1774 = vmul.f32 %v1772, %v1772
    %v1775 = vsel %vm75, %v1773, 0.0
    %1776 = vadd.xlane.f32.xlu0 %v1775
    %v1777 = vpop.xlane.xlu0 %1776
    %v1778 = vsel %vm75, %v1774, 0.0
    %1779 = vadd.xlane.f32.xlu0 %v1778
    %v1780 = vpop.xlane.xlu0 %1779
    %v1781 = vmul.f32 %v1777, %v1522
    %v1782 = vmul.f32 %v1780, %v1522
    %v1783 = vadd.f32 %v1781, 1e-05
    %v1784 = vadd.f32 %v1782, 1e-05
    %v1785 = vrsqrt.pop %v1783
    %v1786 = vrsqrt.pop %v1784
    %v1787 = vmul.f32 %v1771, %v1785
    %v1788 = vmul.f32 %v1772, %v1786
    %1789 = vrot.lane.b32.xlu0 %v1546, 64
    %v1790 = vpop.permute.xlu0 %1789
    %v1792 = vmul.f32 %v1787, %v1790
    %v1793 = vmul.f32 %v1788, %v1790
    %1794 = vrot.lane.b32.xlu0 %v1546, 32
    %v1795 = vpop.permute.xlu0 %1794
    %v1797 = vadd.f32 %v1792, %v1795
    %v1798 = vadd.f32 %v1793, %v1795
    %v1799 = vsel %vm75, %v1797, 0.0
    %1800 = vadd.xlane.f32.xlu0 %v1799
    %v1801 = vpop.xlane.xlu0 %1800
    %v1802 = vsel %vm75, %v1798, 0.0
    %1803 = vadd.xlane.f32.xlu0 %v1802
    %v1804 = vpop.xlane.xlu0 %1803
    %v1805 = vmul.f32 %v1801, %v1522
    %v1806 = vmul.f32 %v1804, %v1522
    %v1807 = vsub.f32 %v1797, %v1805
    %v1808 = vsub.f32 %v1798, %v1806
    %v1809 = vmul.f32 %v1807, %v1807
    %v1810 = vmul.f32 %v1808, %v1808
    %v1811 = vsel %vm75, %v1809, 0.0
    %1812 = vadd.xlane.f32.xlu0 %v1811
    %v1813 = vpop.xlane.xlu0 %1812
    %v1814 = vsel %vm75, %v1810, 0.0
    %1815 = vadd.xlane.f32.xlu0 %v1814
    %v1816 = vpop.xlane.xlu0 %1815
    %v1817 = vmul.f32 %v1813, %v1522
    %v1818 = vmul.f32 %v1816, %v1522
    %v1819 = vadd.f32 %v1817, 1e-05
    %v1820 = vadd.f32 %v1818, 1e-05
    %v1821 = vrsqrt.pop %v1819
    %v1822 = vrsqrt.pop %v1820
    %v1823 = vmul.f32 %v1807, %v1821
    %v1824 = vmul.f32 %v1808, %v1822
    %v1825 = vmul.f32 %v1823, %v1546
    %v1826 = vmul.f32 %v1824, %v1546
    %v1827 = vadd.f32 %v1825, %v1551
    %v1828 = vadd.f32 %v1826, %v1551
    %v1829 = vadd.f32 %v1555, %v1827
    %v1830 = vadd.f32 %v1556, %v1828
    %1831 = vst.msk [vmem:[#allocation8] sm:$0xff] %vm75, %v1829
    %1832 = vst.msk [vmem:[#allocation8 + $0x8] sm:$0xff] %vm75, %v1830
    // Predicated region
    $region26: #{tpu_custom_call.1} parent=1 // pred_check
      _
    $region27: #{tpu_custom_call.1} parent=1 // pred_check_branch
      %1834 = sbr.rel (0) target = $region29
    $region28: #{tpu_custom_call.1} parent=1 // pred_region
      %s1836 = ssub.s32 256, 256
      %1837 = vsyncadd [#allocation4], %s1836
      %s1838 = sshll.u32 [#allocation8], 4
      %s1839 = int_to_ptr.vmem [resolvable:$true] %s1838
      %1844 = dma.vmem_to_hbm [thread:$0]  %s1839, 256, %s3, [#allocation4], 128, 128, 8
    $region29: #{tpu_custom_call.1} parent=1 // pred_fallthru
      _
    // Predicated region
    $region30: #{tpu_custom_call.1} parent=1 // pred_check
      _
    $region31: #{tpu_custom_call.1} parent=1 // pred_check_branch
      %1846 = sbr.rel (0) target = $region33
    $region32: #{tpu_custom_call.1} parent=1 // pred_region
      %1847 = dma.done [#allocation4], 256
    $region33: #{tpu_custom_call.1} parent=1 // pred_fallthru
      _
    %1848 = vsyncpa [#allocation3], 1
    %1849 = vsyncpa [#allocation6], 1
    %1850 = vsyncpa [#allocation4], 1

</llo_original>
